<compile_context>
chip_gen: v7x
topology: tpu7x:2x2x1
jax: 0.10.0
libtpu: 0.0.40
codegen_flags: <defaults>
</compile_context>

<pallas_src>
import functools

import jax
import jax.numpy as jnp
from jax.experimental import pallas as pl
from jax.experimental.pallas import tpu as pltpu


_UNROLL_MAX_STEPS = 64   # fully unroll the recurrence for short sequences


# ----------------------------------------------------------------------------
# Fused kernel: all LSTM layers + FC + log_softmax + NLL in one invocation.
# Gate order follows PyTorch: i, f, g, o.
# ----------------------------------------------------------------------------
def _fused_kernel(*refs, L, S, Bp, H, O, real_B):
    # ---- unpack refs --------------------------------------------------------
    x_ref = refs[0]                                     # (S*Bp, E)   bf16
    layer_refs = [refs[1 + 3 * l: 4 + 3 * l] for l in range(L)]
    #   each: wih (in,4H) bf16, whh (H,4H) bf16, bias (1,4H) f32
    h0_ref, c0_ref, fcw_ref, fcb_ref, labels_ref = refs[1 + 3 * L: 6 + 3 * L]
    logps_ref, loss_ref, hn_ref, cn_ref = refs[6 + 3 * L: 10 + 3 * L]
    slab_ref, gx_ref = refs[10 + 3 * L:]                # bf16 VMEM scratch

    h = None
    for l in range(L):
        wih_ref, whh_ref, b_ref = layer_refs[l]
        x_in_ref = x_ref if l == 0 else slab_ref        # previous layer's slab

        # (1) Hoisted input projection: one big bf16 MXU matmul per layer,
        #     staged as bf16 in VMEM scratch (halves the biggest VMEM tenant).
        gx = jnp.dot(x_in_ref[...], wih_ref[...],
                     preferred_element_type=jnp.float32)
        gx_ref[...] = gx.astype(jnp.bfloat16)

        whh = whh_ref[...]                              # (H,4H) bf16, resident
        bias = b_ref[...]                               # (1,4H) f32 (b_ih+b_hh)
        h = h0_ref[l]                                   # (Bp,H) f32
        c = c0_ref[l]
        write_slab = l < L - 1                          # last layer: only h_n needed

        def step(h_prev, c_prev, gx_t):
            # Only this small matmul stays on the serial critical path.
            gates = (gx_t.astype(jnp.float32) + bias
                     + jnp.dot(h_prev.astype(jnp.bfloat16), whh,
                               preferred_element_type=jnp.float32))
            i_g = jax.nn.sigmoid(gates[:, 0 * H:1 * H])
            f_g = jax.nn.sigmoid(gates[:, 1 * H:2 * H])
            g_g = jnp.tanh(gates[:, 2 * H:3 * H])
            o_g = jax.nn.sigmoid(gates[:, 3 * H:4 * H])
            c_new = f_g * c_prev + i_g * g_g
            h_new = o_g * jnp.tanh(c_new)               # gate math in f32 (v5e VPU)
            return h_new, c_new

        if S <= _UNROLL_MAX_STEPS:
            # Static unroll: static slices, full LLO scheduling visibility.
            for t in range(S):
                h, c = step(h, c, gx_ref[t * Bp:(t + 1) * Bp, :])
                if write_slab:
                    slab_ref[t * Bp:(t + 1) * Bp, :] = h.astype(jnp.bfloat16)
        else:
            def body(t, carry):
                h_p, c_p = carry
                off = pl.multiple_of(t * Bp, 8)         # Bp is a multiple of 8
                h_n, c_n = step(h_p, c_p, gx_ref[pl.ds(off, Bp), :])
                if write_slab:
                    slab_ref[pl.ds(off, Bp), :] = h_n.astype(jnp.bfloat16)
                return h_n, c_n
            h, c = jax.lax.fori_loop(0, S, body, (h, c), unroll=4)

        hn_ref[l] = h                                   # written once per layer
        cn_ref[l] = c

    # ---- head: Dropout (identity in eval) -> FC -> log_softmax -> NLL -------
    logits = (jnp.dot(h.astype(jnp.bfloat16), fcw_ref[...],
                      preferred_element_type=jnp.float32) + fcb_ref[...])
    m = jnp.max(logits, axis=1, keepdims=True)
    lse = jnp.log(jnp.sum(jnp.exp(logits - m), axis=1, keepdims=True)) + m
    logps = logits - lse
    logps_ref[...] = logps

    # NLLLoss (mean over the real batch) from SMEM labels — no one-hot tile.
    row_ids = jax.lax.broadcasted_iota(jnp.int32, (Bp, O), 0)
    col_ids = jax.lax.broadcasted_iota(jnp.int32, (Bp, O), 1)
    mask = jnp.zeros((Bp, O), jnp.float32)
    for b in range(real_B):
        mask = jnp.where((row_ids == b) & (col_ids == labels_ref[b]), 1.0, mask)
    loss_ref[...] = (-jnp.sum(logps * mask) / real_B).reshape(1, 1)


def fused_lstm_classifier(x2d, lstm_params, h0, c0, fc_w_t, fc_b, labels,
                          *, S, Bp, real_B, O):
    """x2d: (S*Bp, E) bf16.  Returns (logps, loss, h_n, c_n), padded batch Bp."""
    L = len(lstm_params)
    H = h0.shape[-1]

    inputs = [x2d]
    for p in lstm_params:
        inputs += [p["w_ih_t"], p["w_hh_t"], p["b"]]
    inputs += [h0, c0, fc_w_t, fc_b, labels]

    vmem = pl.BlockSpec(memory_space=pltpu.MemorySpace.VMEM)
    smem = pl.BlockSpec(memory_space=pltpu.MemorySpace.SMEM)
    in_specs = [vmem] * (len(inputs) - 1) + [smem]      # labels live in SMEM

    # VMEM budget estimate (single-buffered inputs + outputs + bf16 scratch),
    # with 2x headroom, clamped to 48 MiB (safe on v7x's 64 MiB physical).
    vmem_bytes = sum(int(a.size) * a.dtype.itemsize for a in inputs[:-1])
    vmem_bytes += (Bp * O + 1 + 2 * L * Bp * H) * 4                   # f32 outs
    vmem_bytes += S * Bp * H * 2 + S * Bp * 4 * H * 2                 # bf16 scratch
    vmem_limit = int(min(max(2 * vmem_bytes, 16 * 2**20), 48 * 2**20))

    kernel = functools.partial(_fused_kernel, L=L, S=S, Bp=Bp, H=H, O=O,
                               real_B=real_B)

    return pl.pallas_call(
        kernel,
        out_shape=(
            jax.ShapeDtypeStruct((Bp, O), jnp.float32),    # logps (padded rows junk)
            jax.ShapeDtypeStruct((1, 1), jnp.float32),     # loss
            jax.ShapeDtypeStruct((L, Bp, H), jnp.float32), # final h per layer
            jax.ShapeDtypeStruct((L, Bp, H), jnp.float32), # final c per layer
        ),
        in_specs=in_specs,
        out_specs=(vmem, vmem, vmem, vmem),
        scratch_shapes=[
            pltpu.VMEM((S * Bp, H), jnp.bfloat16),         # inter-layer slab
            pltpu.VMEM((S * Bp, 4 * H), jnp.bfloat16),     # staged input-proj gates
        ],
        compiler_params=pltpu.CompilerParams(vmem_limit_bytes=vmem_limit),
    )(*inputs)


# ----------------------------------------------------------------------------
# Parameter construction + full forward (eval mode).
# ----------------------------------------------------------------------------
def init_params(key, vocab_size, embed_size, lstm_size, output_size,
                lstm_layers):
    params = {}
    k_emb, k_lstm, k_fc = jax.random.split(key, 3)
    params["embedding"] = jax.random.normal(
        k_emb, (vocab_size, embed_size), jnp.float32)

    params["lstm"] = []
    bound = 1.0 / jnp.sqrt(lstm_size)
    ks = jax.random.split(k_lstm, lstm_layers * 4)
    for layer in range(lstm_layers):
        in_size = embed_size if layer == 0 else lstm_size
        kw0, kw1, kb0, kb1 = ks[4 * layer:4 * layer + 4]
        w_ih = jax.random.uniform(kw0, (4 * lstm_size, in_size),
                                  jnp.float32, -bound, bound)
        w_hh = jax.random.uniform(kw1, (4 * lstm_size, lstm_size),
                                  jnp.float32, -bound, bound)
        b_ih = jax.random.uniform(kb0, (4 * lstm_size,), jnp.float32,
                                  -bound, bound)
        b_hh = jax.random.uniform(kb1, (4 * lstm_size,), jnp.float32,
                                  -bound, bound)
        params["lstm"].append(dict(
            # Pre-transposed once here; bf16 MXU operands, f32 bias/accumulate.
            w_ih_t=w_ih.T.astype(jnp.bfloat16),        # (in, 4H)
            w_hh_t=w_hh.T.astype(jnp.bfloat16),        # (H, 4H)
            b=(b_ih + b_hh)[None, :].astype(jnp.float32),
        ))

    kfw, kfb = jax.random.split(k_fc)
    fb = 1.0 / jnp.sqrt(lstm_size)
    fc_w = jax.random.uniform(kfw, (output_size, lstm_size),
                              jnp.float32, -fb, fb)
    params["fc_w_t"] = fc_w.T.astype(jnp.bfloat16)      # (H, O), pre-transposed
    params["fc_b"] = jax.random.uniform(kfb, (1, output_size),
                                        jnp.float32, -fb, fb)
    return params


def forward(params, hidden_state, input_ids, attention_mask, labels,
            output_size):
    # attention_mask is unused, mirroring the reference forward().
    del attention_mask
    h0_all, c0_all = hidden_state            # (L, B, H) each
    S, B = input_ids.shape
    L = h0_all.shape[0]
    O = output_size

    # Pad batch to a multiple of 8 (f32 sublane) so h/c/out vregs and the
    # per-step (B,H)@(H,4H) matmul rows are sublane-dense.
    Bp = max(8, ((B + 7) // 8) * 8)
    pad = Bp - B
    ids_p = jnp.pad(input_ids, ((0, 0), (0, pad)))
    h0_p = jnp.pad(h0_all, ((0, 0), (0, pad), (0, 0)))
    c0_p = jnp.pad(c0_all, ((0, 0), (0, pad), (0, 0)))
    labels_p = jnp.pad(labels, (0, pad)).astype(jnp.int32)

    # Embedding gather (glue JAX), flattened seq-major to (S*Bp, E) in bf16 so
    # every layer's input projection is one bf16 MXU matmul; row t*Bp + b is
    # (timestep t, batch b).
    # TODO(synk): the gather could be fused into the kernel via prefetched ids.
    x2d = jnp.take(params["embedding"], ids_p.reshape(-1),
                   axis=0).astype(jnp.bfloat16)

    logps_p, loss, hn_p, cn_p = fused_lstm_classifier(
        x2d, params["lstm"], h0_p, c0_p, params["fc_w_t"], params["fc_b"],
        labels_p, S=S, Bp=Bp, real_B=B, O=O)

    logps = logps_p[:B]
    new_hidden = (hn_p[:, :B, :], cn_p[:, :B, :])
    return logps, new_hidden, loss[0, 0]


if __name__ == "__main__":
    # Small, forward-consistent shapes.
    vocab_size, embed_size, lstm_size = 50, 32, 32
    output_size, lstm_layers, dropout = 4, 2, 0.3
    seq_len, batch = 8, 2

    key = jax.random.PRNGKey(0)
    k_params, k_ids, k_lab = jax.random.split(key, 3)

    params = init_params(k_params, vocab_size, embed_size, lstm_size,
                         output_size, lstm_layers)

    input_ids = jax.random.randint(k_ids, (seq_len, batch), 0, vocab_size,
                                   dtype=jnp.int32)
    attention_mask = jnp.ones((seq_len, batch), jnp.int32)
    labels = jax.random.randint(k_lab, (batch,), 0, output_size,
                                dtype=jnp.int32)

    # init_hidden(batch): zeros of shape (lstm_layers, batch, lstm_size).
    hidden_state = (jnp.zeros((lstm_layers, batch, lstm_size), jnp.float32),
                    jnp.zeros((lstm_layers, batch, lstm_size), jnp.float32))

    fwd = jax.jit(functools.partial(forward, output_size=output_size))
    logps, new_hidden, loss = fwd(params, hidden_state, input_ids,
                                  attention_mask, labels)
    jax.block_until_ready((logps, new_hidden, loss))

    assert logps.shape == (batch, output_size)
    assert new_hidden[0].shape == (lstm_layers, batch, lstm_size)
    assert new_hidden[1].shape == (lstm_layers, batch, lstm_size)
    # log_softmax rows must sum to 1 in prob space.
    assert jnp.allclose(jnp.sum(jnp.exp(logps), axis=1), 1.0, atol=1e-2)
    assert bool(jnp.isfinite(loss))

    print("KERNEL_OK")
</pallas_src>

<mosaic_0001>
module attributes {stable_mosaic.version = 11 : i64} {
  func.func @_fused_kernel(%arg0: memref<64x32xbf16, #tpu.memory_space<vmem>>, %arg1: memref<32x128xbf16, #tpu.memory_space<vmem>>, %arg2: memref<32x128xbf16, #tpu.memory_space<vmem>>, %arg3: memref<1x128xf32, #tpu.memory_space<vmem>>, %arg4: memref<32x128xbf16, #tpu.memory_space<vmem>>, %arg5: memref<32x128xbf16, #tpu.memory_space<vmem>>, %arg6: memref<1x128xf32, #tpu.memory_space<vmem>>, %arg7: memref<2x8x32xf32, #tpu.memory_space<vmem>>, %arg8: memref<2x8x32xf32, #tpu.memory_space<vmem>>, %arg9: memref<32x4xbf16, #tpu.memory_space<vmem>>, %arg10: memref<1x4xf32, #tpu.memory_space<vmem>>, %arg11: memref<8xi32, #tpu.memory_space<smem>>, %arg12: memref<8x4xf32, #tpu.memory_space<vmem>>, %arg13: memref<1x1xf32, #tpu.memory_space<vmem>>, %arg14: memref<2x8x32xf32, #tpu.memory_space<vmem>>, %arg15: memref<2x8x32xf32, #tpu.memory_space<vmem>>, %arg16: memref<64x32xbf16, #tpu.memory_space<vmem>>, %arg17: memref<64x128xbf16, #tpu.memory_space<vmem>>) attributes {dimension_semantics = [], scalar_prefetch = 0 : i64, scratch_operands = 2 : i64, tpu.core_type = #tpu.core_type<tc>} {
    %c0 = arith.constant 0 : index
    %c0_0 = arith.constant 0 : index
    %0 = vector.load %arg0[%c0, %c0_0] : memref<64x32xbf16, #tpu.memory_space<vmem>>, vector<64x32xbf16>
    %c0_1 = arith.constant 0 : index
    %c0_2 = arith.constant 0 : index
    %1 = vector.load %arg1[%c0_1, %c0_2] : memref<32x128xbf16, #tpu.memory_space<vmem>>, vector<32x128xbf16>
    %cst = arith.constant dense<0.000000e+00> : vector<64x128xf32>
    %2 = tpu.matmul %0, %1, %cst {dimension_numbers = #tpu.dot_dimension_numbers<[1], [0], [0], [1], [0, 0, 1, 1], [], []>} : vector<64x32xbf16>, vector<32x128xbf16>, vector<64x128xf32> -> vector<64x128xf32>
    %3 = arith.truncf %2 : vector<64x128xf32> to vector<64x128xbf16>
    %c0_3 = arith.constant 0 : index
    %c0_4 = arith.constant 0 : index
    %4 = vector.load %arg17[%c0_3, %c0_4] : memref<64x128xbf16, #tpu.memory_space<vmem>>, vector<64x128xbf16>
    tpu.vector_store %arg17[%c0_3, %c0_4], %3 {strides = array<i32>} : memref<64x128xbf16, #tpu.memory_space<vmem>>, vector<64x128xbf16>,
    %c0_5 = arith.constant 0 : index
    %c0_6 = arith.constant 0 : index
    %5 = vector.load %arg2[%c0_5, %c0_6] : memref<32x128xbf16, #tpu.memory_space<vmem>>, vector<32x128xbf16>
    %c0_7 = arith.constant 0 : index
    %c0_8 = arith.constant 0 : index
    %6 = vector.load %arg3[%c0_7, %c0_8] : memref<1x128xf32, #tpu.memory_space<vmem>>, vector<1x128xf32>
    %c0_9 = arith.constant 0 : index
    %c0_10 = arith.constant 0 : index
    %c0_11 = arith.constant 0 : index
    %7 = vector.load %arg7[%c0_9, %c0_10, %c0_11] : memref<2x8x32xf32, #tpu.memory_space<vmem>>, vector<1x8x32xf32>
    %8 = vector.shape_cast %7 : vector<1x8x32xf32> to vector<8x32xf32>
    %c0_12 = arith.constant 0 : index
    %c0_13 = arith.constant 0 : index
    %c0_14 = arith.constant 0 : index
    %9 = vector.load %arg8[%c0_12, %c0_13, %c0_14] : memref<2x8x32xf32, #tpu.memory_space<vmem>>, vector<1x8x32xf32>
    %10 = vector.shape_cast %9 : vector<1x8x32xf32> to vector<8x32xf32>
    %c0_15 = arith.constant 0 : index
    %c0_16 = arith.constant 0 : index
    %11 = vector.load %arg17[%c0_15, %c0_16] : memref<64x128xbf16, #tpu.memory_space<vmem>>, vector<8x128xbf16>
    %12 = arith.extf %11 : vector<8x128xbf16> to vector<8x128xf32>
    %13 = vector.broadcast %6 : vector<1x128xf32> to vector<8x128xf32>
    %14 = arith.addf %12, %13 : vector<8x128xf32>
    %15 = arith.truncf %8 : vector<8x32xf32> to vector<8x32xbf16>
    %cst_17 = arith.constant dense<0.000000e+00> : vector<8x128xf32>
    %16 = tpu.matmul %15, %5, %cst_17 {dimension_numbers = #tpu.dot_dimension_numbers<[1], [0], [0], [1], [0, 0, 1, 1], [], []>} : vector<8x32xbf16>, vector<32x128xbf16>, vector<8x128xf32> -> vector<8x128xf32>
    %17 = arith.addf %14, %16 : vector<8x128xf32>
    %18 = vector.extract_strided_slice %17 {offsets = [0, 0], sizes = [8, 32], strides = [1, 1]} : vector<8x128xf32> to vector<8x32xf32>
    %19 = arith.negf %18 : vector<8x32xf32>
    %20 = math.exp %19 : vector<8x32xf32>
    %cst_18 = arith.constant 1.000000e+00 : f32
    %21 = vector.broadcast %cst_18 : f32 to vector<8x32xf32>
    %22 = arith.addf %21, %20 : vector<8x32xf32>
    %23 = arith.divf %21, %22 : vector<8x32xf32>
    %24 = vector.extract_strided_slice %17 {offsets = [0, 32], sizes = [8, 32], strides = [1, 1]} : vector<8x128xf32> to vector<8x32xf32>
    %25 = arith.negf %24 : vector<8x32xf32>
    %26 = math.exp %25 : vector<8x32xf32>
    %cst_19 = arith.constant 1.000000e+00 : f32
    %27 = vector.broadcast %cst_19 : f32 to vector<8x32xf32>
    %28 = arith.addf %27, %26 : vector<8x32xf32>
    %29 = arith.divf %27, %28 : vector<8x32xf32>
    %30 = vector.extract_strided_slice %17 {offsets = [0, 64], sizes = [8, 32], strides = [1, 1]} : vector<8x128xf32> to vector<8x32xf32>
    %31 = math.tanh %30 : vector<8x32xf32>
    %32 = vector.extract_strided_slice %17 {offsets = [0, 96], sizes = [8, 32], strides = [1, 1]} : vector<8x128xf32> to vector<8x32xf32>
    %33 = arith.negf %32 : vector<8x32xf32>
    %34 = math.exp %33 : vector<8x32xf32>
    %cst_20 = arith.constant 1.000000e+00 : f32
    %35 = vector.broadcast %cst_20 : f32 to vector<8x32xf32>
    %36 = arith.addf %35, %34 : vector<8x32xf32>
    %37 = arith.divf %35, %36 : vector<8x32xf32>
    %38 = arith.mulf %29, %10 : vector<8x32xf32>
    %39 = arith.mulf %23, %31 : vector<8x32xf32>
    %40 = arith.addf %38, %39 : vector<8x32xf32>
    %41 = math.tanh %40 : vector<8x32xf32>
    %42 = arith.mulf %37, %41 : vector<8x32xf32>
    %43 = arith.truncf %42 : vector<8x32xf32> to vector<8x32xbf16>
    %c0_21 = arith.constant 0 : index
    %c0_22 = arith.constant 0 : index
    %44 = vector.load %arg16[%c0_21, %c0_22] : memref<64x32xbf16, #tpu.memory_space<vmem>>, vector<8x32xbf16>
    tpu.vector_store %arg16[%c0_21, %c0_22], %43 {strides = array<i32>} : memref<64x32xbf16, #tpu.memory_space<vmem>>, vector<8x32xbf16>,
    %c8 = arith.constant 8 : index
    %c0_23 = arith.constant 0 : index
    %45 = vector.load %arg17[%c8, %c0_23] : memref<64x128xbf16, #tpu.memory_space<vmem>>, vector<8x128xbf16>
    %46 = arith.extf %45 : vector<8x128xbf16> to vector<8x128xf32>
    %47 = vector.broadcast %6 : vector<1x128xf32> to vector<8x128xf32>
    %48 = arith.addf %46, %47 : vector<8x128xf32>
    %49 = arith.truncf %42 : vector<8x32xf32> to vector<8x32xbf16>
    %cst_24 = arith.constant dense<0.000000e+00> : vector<8x128xf32>
    %50 = tpu.matmul %49, %5, %cst_24 {dimension_numbers = #tpu.dot_dimension_numbers<[1], [0], [0], [1], [0, 0, 1, 1], [], []>} : vector<8x32xbf16>, vector<32x128xbf16>, vector<8x128xf32> -> vector<8x128xf32>
    %51 = arith.addf %48, %50 : vector<8x128xf32>
    %52 = vector.extract_strided_slice %51 {offsets = [0, 0], sizes = [8, 32], strides = [1, 1]} : vector<8x128xf32> to vector<8x32xf32>
    %53 = arith.negf %52 : vector<8x32xf32>
    %54 = math.exp %53 : vector<8x32xf32>
    %cst_25 = arith.constant 1.000000e+00 : f32
    %55 = vector.broadcast %cst_25 : f32 to vector<8x32xf32>
    %56 = arith.addf %55, %54 : vector<8x32xf32>
    %57 = arith.divf %55, %56 : vector<8x32xf32>
    %58 = vector.extract_strided_slice %51 {offsets = [0, 32], sizes = [8, 32], strides = [1, 1]} : vector<8x128xf32> to vector<8x32xf32>
    %59 = arith.negf %58 : vector<8x32xf32>
    %60 = math.exp %59 : vector<8x32xf32>
    %cst_26 = arith.constant 1.000000e+00 : f32
    %61 = vector.broadcast %cst_26 : f32 to vector<8x32xf32>
    %62 = arith.addf %61, %60 : vector<8x32xf32>
    %63 = arith.divf %61, %62 : vector<8x32xf32>
    %64 = vector.extract_strided_slice %51 {offsets = [0, 64], sizes = [8, 32], strides = [1, 1]} : vector<8x128xf32> to vector<8x32xf32>
    %65 = math.tanh %64 : vector<8x32xf32>
    %66 = vector.extract_strided_slice %51 {offsets = [0, 96], sizes = [8, 32], strides = [1, 1]} : vector<8x128xf32> to vector<8x32xf32>
    %67 = arith.negf %66 : vector<8x32xf32>
    %68 = math.exp %67 : vector<8x32xf32>
    %cst_27 = arith.constant 1.000000e+00 : f32
    %69 = vector.broadcast %cst_27 : f32 to vector<8x32xf32>
    %70 = arith.addf %69, %68 : vector<8x32xf32>
    %71 = arith.divf %69, %70 : vector<8x32xf32>
    %72 = arith.mulf %63, %40 : vector<8x32xf32>
    %73 = arith.mulf %57, %65 : vector<8x32xf32>
    %74 = arith.addf %72, %73 : vector<8x32xf32>
    %75 = math.tanh %74 : vector<8x32xf32>
    %76 = arith.mulf %71, %75 : vector<8x32xf32>
    %77 = arith.truncf %76 : vector<8x32xf32> to vector<8x32xbf16>
    %c8_28 = arith.constant 8 : index
    %c0_29 = arith.constant 0 : index
    %78 = vector.load %arg16[%c8_28, %c0_29] : memref<64x32xbf16, #tpu.memory_space<vmem>>, vector<8x32xbf16>
    tpu.vector_store %arg16[%c8_28, %c0_29], %77 {strides = array<i32>} : memref<64x32xbf16, #tpu.memory_space<vmem>>, vector<8x32xbf16>,
    %c16 = arith.constant 16 : index
    %c0_30 = arith.constant 0 : index
    %79 = vector.load %arg17[%c16, %c0_30] : memref<64x128xbf16, #tpu.memory_space<vmem>>, vector<8x128xbf16>
    %80 = arith.extf %79 : vector<8x128xbf16> to vector<8x128xf32>
    %81 = vector.broadcast %6 : vector<1x128xf32> to vector<8x128xf32>
    %82 = arith.addf %80, %81 : vector<8x128xf32>
    %83 = arith.truncf %76 : vector<8x32xf32> to vector<8x32xbf16>
    %cst_31 = arith.constant dense<0.000000e+00> : vector<8x128xf32>
    %84 = tpu.matmul %83, %5, %cst_31 {dimension_numbers = #tpu.dot_dimension_numbers<[1], [0], [0], [1], [0, 0, 1, 1], [], []>} : vector<8x32xbf16>, vector<32x128xbf16>, vector<8x128xf32> -> vector<8x128xf32>
    %85 = arith.addf %82, %84 : vector<8x128xf32>
    %86 = vector.extract_strided_slice %85 {offsets = [0, 0], sizes = [8, 32], strides = [1, 1]} : vector<8x128xf32> to vector<8x32xf32>
    %87 = arith.negf %86 : vector<8x32xf32>
    %88 = math.exp %87 : vector<8x32xf32>
    %cst_32 = arith.constant 1.000000e+00 : f32
    %89 = vector.broadcast %cst_32 : f32 to vector<8x32xf32>
    %90 = arith.addf %89, %88 : vector<8x32xf32>
    %91 = arith.divf %89, %90 : vector<8x32xf32>
    %92 = vector.extract_strided_slice %85 {offsets = [0, 32], sizes = [8, 32], strides = [1, 1]} : vector<8x128xf32> to vector<8x32xf32>
    %93 = arith.negf %92 : vector<8x32xf32>
    %94 = math.exp %93 : vector<8x32xf32>
    %cst_33 = arith.constant 1.000000e+00 : f32
    %95 = vector.broadcast %cst_33 : f32 to vector<8x32xf32>
    %96 = arith.addf %95, %94 : vector<8x32xf32>
    %97 = arith.divf %95, %96 : vector<8x32xf32>
    %98 = vector.extract_strided_slice %85 {offsets = [0, 64], sizes = [8, 32], strides = [1, 1]} : vector<8x128xf32> to vector<8x32xf32>
    %99 = math.tanh %98 : vector<8x32xf32>
    %100 = vector.extract_strided_slice %85 {offsets = [0, 96], sizes = [8, 32], strides = [1, 1]} : vector<8x128xf32> to vector<8x32xf32>
    %101 = arith.negf %100 : vector<8x32xf32>
    %102 = math.exp %101 : vector<8x32xf32>
    %cst_34 = arith.constant 1.000000e+00 : f32
    %103 = vector.broadcast %cst_34 : f32 to vector<8x32xf32>
    %104 = arith.addf %103, %102 : vector<8x32xf32>
    %105 = arith.divf %103, %104 : vector<8x32xf32>
    %106 = arith.mulf %97, %74 : vector<8x32xf32>
    %107 = arith.mulf %91, %99 : vector<8x32xf32>
    %108 = arith.addf %106, %107 : vector<8x32xf32>
    %109 = math.tanh %108 : vector<8x32xf32>
    %110 = arith.mulf %105, %109 : vector<8x32xf32>
    %111 = arith.truncf %110 : vector<8x32xf32> to vector<8x32xbf16>
    %c16_35 = arith.constant 16 : index
    %c0_36 = arith.constant 0 : index
    %112 = vector.load %arg16[%c16_35, %c0_36] : memref<64x32xbf16, #tpu.memory_space<vmem>>, vector<8x32xbf16>
    tpu.vector_store %arg16[%c16_35, %c0_36], %111 {strides = array<i32>} : memref<64x32xbf16, #tpu.memory_space<vmem>>, vector<8x32xbf16>,
    %c24 = arith.constant 24 : index
    %c0_37 = arith.constant 0 : index
    %113 = vector.load %arg17[%c24, %c0_37] : memref<64x128xbf16, #tpu.memory_space<vmem>>, vector<8x128xbf16>
    %114 = arith.extf %113 : vector<8x128xbf16> to vector<8x128xf32>
    %115 = vector.broadcast %6 : vector<1x128xf32> to vector<8x128xf32>
    %116 = arith.addf %114, %115 : vector<8x128xf32>
    %117 = arith.truncf %110 : vector<8x32xf32> to vector<8x32xbf16>
    %cst_38 = arith.constant dense<0.000000e+00> : vector<8x128xf32>
    %118 = tpu.matmul %117, %5, %cst_38 {dimension_numbers = #tpu.dot_dimension_numbers<[1], [0], [0], [1], [0, 0, 1, 1], [], []>} : vector<8x32xbf16>, vector<32x128xbf16>, vector<8x128xf32> -> vector<8x128xf32>
    %119 = arith.addf %116, %118 : vector<8x128xf32>
    %120 = vector.extract_strided_slice %119 {offsets = [0, 0], sizes = [8, 32], strides = [1, 1]} : vector<8x128xf32> to vector<8x32xf32>
    %121 = arith.negf %120 : vector<8x32xf32>
    %122 = math.exp %121 : vector<8x32xf32>
    %cst_39 = arith.constant 1.000000e+00 : f32
    %123 = vector.broadcast %cst_39 : f32 to vector<8x32xf32>
    %124 = arith.addf %123, %122 : vector<8x32xf32>
    %125 = arith.divf %123, %124 : vector<8x32xf32>
    %126 = vector.extract_strided_slice %119 {offsets = [0, 32], sizes = [8, 32], strides = [1, 1]} : vector<8x128xf32> to vector<8x32xf32>
    %127 = arith.negf %126 : vector<8x32xf32>
    %128 = math.exp %127 : vector<8x32xf32>
    %cst_40 = arith.constant 1.000000e+00 : f32
    %129 = vector.broadcast %cst_40 : f32 to vector<8x32xf32>
    %130 = arith.addf %129, %128 : vector<8x32xf32>
    %131 = arith.divf %129, %130 : vector<8x32xf32>
    %132 = vector.extract_strided_slice %119 {offsets = [0, 64], sizes = [8, 32], strides = [1, 1]} : vector<8x128xf32> to vector<8x32xf32>
    %133 = math.tanh %132 : vector<8x32xf32>
    %134 = vector.extract_strided_slice %119 {offsets = [0, 96], sizes = [8, 32], strides = [1, 1]} : vector<8x128xf32> to vector<8x32xf32>
    %135 = arith.negf %134 : vector<8x32xf32>
    %136 = math.exp %135 : vector<8x32xf32>
    %cst_41 = arith.constant 1.000000e+00 : f32
    %137 = vector.broadcast %cst_41 : f32 to vector<8x32xf32>
    %138 = arith.addf %137, %136 : vector<8x32xf32>
    %139 = arith.divf %137, %138 : vector<8x32xf32>
    %140 = arith.mulf %131, %108 : vector<8x32xf32>
    %141 = arith.mulf %125, %133 : vector<8x32xf32>
    %142 = arith.addf %140, %141 : vector<8x32xf32>
    %143 = math.tanh %142 : vector<8x32xf32>
    %144 = arith.mulf %139, %143 : vector<8x32xf32>
    %145 = arith.truncf %144 : vector<8x32xf32> to vector<8x32xbf16>
    %c24_42 = arith.constant 24 : index
    %c0_43 = arith.constant 0 : index
    %146 = vector.load %arg16[%c24_42, %c0_43] : memref<64x32xbf16, #tpu.memory_space<vmem>>, vector<8x32xbf16>
    tpu.vector_store %arg16[%c24_42, %c0_43], %145 {strides = array<i32>} : memref<64x32xbf16, #tpu.memory_space<vmem>>, vector<8x32xbf16>,
    %c32 = arith.constant 32 : index
    %c0_44 = arith.constant 0 : index
    %147 = vector.load %arg17[%c32, %c0_44] : memref<64x128xbf16, #tpu.memory_space<vmem>>, vector<8x128xbf16>
    %148 = arith.extf %147 : vector<8x128xbf16> to vector<8x128xf32>
    %149 = vector.broadcast %6 : vector<1x128xf32> to vector<8x128xf32>
    %150 = arith.addf %148, %149 : vector<8x128xf32>
    %151 = arith.truncf %144 : vector<8x32xf32> to vector<8x32xbf16>
    %cst_45 = arith.constant dense<0.000000e+00> : vector<8x128xf32>
    %152 = tpu.matmul %151, %5, %cst_45 {dimension_numbers = #tpu.dot_dimension_numbers<[1], [0], [0], [1], [0, 0, 1, 1], [], []>} : vector<8x32xbf16>, vector<32x128xbf16>, vector<8x128xf32> -> vector<8x128xf32>
    %153 = arith.addf %150, %152 : vector<8x128xf32>
    %154 = vector.extract_strided_slice %153 {offsets = [0, 0], sizes = [8, 32], strides = [1, 1]} : vector<8x128xf32> to vector<8x32xf32>
    %155 = arith.negf %154 : vector<8x32xf32>
    %156 = math.exp %155 : vector<8x32xf32>
    %cst_46 = arith.constant 1.000000e+00 : f32
    %157 = vector.broadcast %cst_46 : f32 to vector<8x32xf32>
    %158 = arith.addf %157, %156 : vector<8x32xf32>
    %159 = arith.divf %157, %158 : vector<8x32xf32>
    %160 = vector.extract_strided_slice %153 {offsets = [0, 32], sizes = [8, 32], strides = [1, 1]} : vector<8x128xf32> to vector<8x32xf32>
    %161 = arith.negf %160 : vector<8x32xf32>
    %162 = math.exp %161 : vector<8x32xf32>
    %cst_47 = arith.constant 1.000000e+00 : f32
    %163 = vector.broadcast %cst_47 : f32 to vector<8x32xf32>
    %164 = arith.addf %163, %162 : vector<8x32xf32>
    %165 = arith.divf %163, %164 : vector<8x32xf32>
    %166 = vector.extract_strided_slice %153 {offsets = [0, 64], sizes = [8, 32], strides = [1, 1]} : vector<8x128xf32> to vector<8x32xf32>
    %167 = math.tanh %166 : vector<8x32xf32>
    %168 = vector.extract_strided_slice %153 {offsets = [0, 96], sizes = [8, 32], strides = [1, 1]} : vector<8x128xf32> to vector<8x32xf32>
    %169 = arith.negf %168 : vector<8x32xf32>
    %170 = math.exp %169 : vector<8x32xf32>
    %cst_48 = arith.constant 1.000000e+00 : f32
    %171 = vector.broadcast %cst_48 : f32 to vector<8x32xf32>
    %172 = arith.addf %171, %170 : vector<8x32xf32>
    %173 = arith.divf %171, %172 : vector<8x32xf32>
    %174 = arith.mulf %165, %142 : vector<8x32xf32>
    %175 = arith.mulf %159, %167 : vector<8x32xf32>
    %176 = arith.addf %174, %175 : vector<8x32xf32>
    %177 = math.tanh %176 : vector<8x32xf32>
    %178 = arith.mulf %173, %177 : vector<8x32xf32>
    %179 = arith.truncf %178 : vector<8x32xf32> to vector<8x32xbf16>
    %c32_49 = arith.constant 32 : index
    %c0_50 = arith.constant 0 : index
    %180 = vector.load %arg16[%c32_49, %c0_50] : memref<64x32xbf16, #tpu.memory_space<vmem>>, vector<8x32xbf16>
    tpu.vector_store %arg16[%c32_49, %c0_50], %179 {strides = array<i32>} : memref<64x32xbf16, #tpu.memory_space<vmem>>, vector<8x32xbf16>,
    %c40 = arith.constant 40 : index
    %c0_51 = arith.constant 0 : index
    %181 = vector.load %arg17[%c40, %c0_51] : memref<64x128xbf16, #tpu.memory_space<vmem>>, vector<8x128xbf16>
    %182 = arith.extf %181 : vector<8x128xbf16> to vector<8x128xf32>
    %183 = vector.broadcast %6 : vector<1x128xf32> to vector<8x128xf32>
    %184 = arith.addf %182, %183 : vector<8x128xf32>
    %185 = arith.truncf %178 : vector<8x32xf32> to vector<8x32xbf16>
    %cst_52 = arith.constant dense<0.000000e+00> : vector<8x128xf32>
    %186 = tpu.matmul %185, %5, %cst_52 {dimension_numbers = #tpu.dot_dimension_numbers<[1], [0], [0], [1], [0, 0, 1, 1], [], []>} : vector<8x32xbf16>, vector<32x128xbf16>, vector<8x128xf32> -> vector<8x128xf32>
    %187 = arith.addf %184, %186 : vector<8x128xf32>
    %188 = vector.extract_strided_slice %187 {offsets = [0, 0], sizes = [8, 32], strides = [1, 1]} : vector<8x128xf32> to vector<8x32xf32>
    %189 = arith.negf %188 : vector<8x32xf32>
    %190 = math.exp %189 : vector<8x32xf32>
    %cst_53 = arith.constant 1.000000e+00 : f32
    %191 = vector.broadcast %cst_53 : f32 to vector<8x32xf32>
    %192 = arith.addf %191, %190 : vector<8x32xf32>
    %193 = arith.divf %191, %192 : vector<8x32xf32>
    %194 = vector.extract_strided_slice %187 {offsets = [0, 32], sizes = [8, 32], strides = [1, 1]} : vector<8x128xf32> to vector<8x32xf32>
    %195 = arith.negf %194 : vector<8x32xf32>
    %196 = math.exp %195 : vector<8x32xf32>
    %cst_54 = arith.constant 1.000000e+00 : f32
    %197 = vector.broadcast %cst_54 : f32 to vector<8x32xf32>
    %198 = arith.addf %197, %196 : vector<8x32xf32>
    %199 = arith.divf %197, %198 : vector<8x32xf32>
    %200 = vector.extract_strided_slice %187 {offsets = [0, 64], sizes = [8, 32], strides = [1, 1]} : vector<8x128xf32> to vector<8x32xf32>
    %201 = math.tanh %200 : vector<8x32xf32>
    %202 = vector.extract_strided_slice %187 {offsets = [0, 96], sizes = [8, 32], strides = [1, 1]} : vector<8x128xf32> to vector<8x32xf32>
    %203 = arith.negf %202 : vector<8x32xf32>
    %204 = math.exp %203 : vector<8x32xf32>
    %cst_55 = arith.constant 1.000000e+00 : f32
    %205 = vector.broadcast %cst_55 : f32 to vector<8x32xf32>
    %206 = arith.addf %205, %204 : vector<8x32xf32>
    %207 = arith.divf %205, %206 : vector<8x32xf32>
    %208 = arith.mulf %199, %176 : vector<8x32xf32>
    %209 = arith.mulf %193, %201 : vector<8x32xf32>
    %210 = arith.addf %208, %209 : vector<8x32xf32>
    %211 = math.tanh %210 : vector<8x32xf32>
    %212 = arith.mulf %207, %211 : vector<8x32xf32>
    %213 = arith.truncf %212 : vector<8x32xf32> to vector<8x32xbf16>
    %c40_56 = arith.constant 40 : index
    %c0_57 = arith.constant 0 : index
    %214 = vector.load %arg16[%c40_56, %c0_57] : memref<64x32xbf16, #tpu.memory_space<vmem>>, vector<8x32xbf16>
    tpu.vector_store %arg16[%c40_56, %c0_57], %213 {strides = array<i32>} : memref<64x32xbf16, #tpu.memory_space<vmem>>, vector<8x32xbf16>,
    %c48 = arith.constant 48 : index
    %c0_58 = arith.constant 0 : index
    %215 = vector.load %arg17[%c48, %c0_58] : memref<64x128xbf16, #tpu.memory_space<vmem>>, vector<8x128xbf16>
    %216 = arith.extf %215 : vector<8x128xbf16> to vector<8x128xf32>
    %217 = vector.broadcast %6 : vector<1x128xf32> to vector<8x128xf32>
    %218 = arith.addf %216, %217 : vector<8x128xf32>
    %219 = arith.truncf %212 : vector<8x32xf32> to vector<8x32xbf16>
    %cst_59 = arith.constant dense<0.000000e+00> : vector<8x128xf32>
    %220 = tpu.matmul %219, %5, %cst_59 {dimension_numbers = #tpu.dot_dimension_numbers<[1], [0], [0], [1], [0, 0, 1, 1], [], []>} : vector<8x32xbf16>, vector<32x128xbf16>, vector<8x128xf32> -> vector<8x128xf32>
    %221 = arith.addf %218, %220 : vector<8x128xf32>
    %222 = vector.extract_strided_slice %221 {offsets = [0, 0], sizes = [8, 32], strides = [1, 1]} : vector<8x128xf32> to vector<8x32xf32>
    %223 = arith.negf %222 : vector<8x32xf32>
    %224 = math.exp %223 : vector<8x32xf32>
    %cst_60 = arith.constant 1.000000e+00 : f32
    %225 = vector.broadcast %cst_60 : f32 to vector<8x32xf32>
    %226 = arith.addf %225, %224 : vector<8x32xf32>
    %227 = arith.divf %225, %226 : vector<8x32xf32>
    %228 = vector.extract_strided_slice %221 {offsets = [0, 32], sizes = [8, 32], strides = [1, 1]} : vector<8x128xf32> to vector<8x32xf32>
    %229 = arith.negf %228 : vector<8x32xf32>
    %230 = math.exp %229 : vector<8x32xf32>
    %cst_61 = arith.constant 1.000000e+00 : f32
    %231 = vector.broadcast %cst_61 : f32 to vector<8x32xf32>
    %232 = arith.addf %231, %230 : vector<8x32xf32>
    %233 = arith.divf %231, %232 : vector<8x32xf32>
    %234 = vector.extract_strided_slice %221 {offsets = [0, 64], sizes = [8, 32], strides = [1, 1]} : vector<8x128xf32> to vector<8x32xf32>
    %235 = math.tanh %234 : vector<8x32xf32>
    %236 = vector.extract_strided_slice %221 {offsets = [0, 96], sizes = [8, 32], strides = [1, 1]} : vector<8x128xf32> to vector<8x32xf32>
    %237 = arith.negf %236 : vector<8x32xf32>
    %238 = math.exp %237 : vector<8x32xf32>
    %cst_62 = arith.constant 1.000000e+00 : f32
    %239 = vector.broadcast %cst_62 : f32 to vector<8x32xf32>
    %240 = arith.addf %239, %238 : vector<8x32xf32>
    %241 = arith.divf %239, %240 : vector<8x32xf32>
    %242 = arith.mulf %233, %210 : vector<8x32xf32>
    %243 = arith.mulf %227, %235 : vector<8x32xf32>
    %244 = arith.addf %242, %243 : vector<8x32xf32>
    %245 = math.tanh %244 : vector<8x32xf32>
    %246 = arith.mulf %241, %245 : vector<8x32xf32>
    %247 = arith.truncf %246 : vector<8x32xf32> to vector<8x32xbf16>
    %c48_63 = arith.constant 48 : index
    %c0_64 = arith.constant 0 : index
    %248 = vector.load %arg16[%c48_63, %c0_64] : memref<64x32xbf16, #tpu.memory_space<vmem>>, vector<8x32xbf16>
    tpu.vector_store %arg16[%c48_63, %c0_64], %247 {strides = array<i32>} : memref<64x32xbf16, #tpu.memory_space<vmem>>, vector<8x32xbf16>,
    %c56 = arith.constant 56 : index
    %c0_65 = arith.constant 0 : index
    %249 = vector.load %arg17[%c56, %c0_65] : memref<64x128xbf16, #tpu.memory_space<vmem>>, vector<8x128xbf16>
    %250 = arith.extf %249 : vector<8x128xbf16> to vector<8x128xf32>
    %251 = vector.broadcast %6 : vector<1x128xf32> to vector<8x128xf32>
    %252 = arith.addf %250, %251 : vector<8x128xf32>
    %253 = arith.truncf %246 : vector<8x32xf32> to vector<8x32xbf16>
    %cst_66 = arith.constant dense<0.000000e+00> : vector<8x128xf32>
    %254 = tpu.matmul %253, %5, %cst_66 {dimension_numbers = #tpu.dot_dimension_numbers<[1], [0], [0], [1], [0, 0, 1, 1], [], []>} : vector<8x32xbf16>, vector<32x128xbf16>, vector<8x128xf32> -> vector<8x128xf32>
    %255 = arith.addf %252, %254 : vector<8x128xf32>
    %256 = vector.extract_strided_slice %255 {offsets = [0, 0], sizes = [8, 32], strides = [1, 1]} : vector<8x128xf32> to vector<8x32xf32>
    %257 = arith.negf %256 : vector<8x32xf32>
    %258 = math.exp %257 : vector<8x32xf32>
    %cst_67 = arith.constant 1.000000e+00 : f32
    %259 = vector.broadcast %cst_67 : f32 to vector<8x32xf32>
    %260 = arith.addf %259, %258 : vector<8x32xf32>
    %261 = arith.divf %259, %260 : vector<8x32xf32>
    %262 = vector.extract_strided_slice %255 {offsets = [0, 32], sizes = [8, 32], strides = [1, 1]} : vector<8x128xf32> to vector<8x32xf32>
    %263 = arith.negf %262 : vector<8x32xf32>
    %264 = math.exp %263 : vector<8x32xf32>
    %cst_68 = arith.constant 1.000000e+00 : f32
    %265 = vector.broadcast %cst_68 : f32 to vector<8x32xf32>
    %266 = arith.addf %265, %264 : vector<8x32xf32>
    %267 = arith.divf %265, %266 : vector<8x32xf32>
    %268 = vector.extract_strided_slice %255 {offsets = [0, 64], sizes = [8, 32], strides = [1, 1]} : vector<8x128xf32> to vector<8x32xf32>
    %269 = math.tanh %268 : vector<8x32xf32>
    %270 = vector.extract_strided_slice %255 {offsets = [0, 96], sizes = [8, 32], strides = [1, 1]} : vector<8x128xf32> to vector<8x32xf32>
    %271 = arith.negf %270 : vector<8x32xf32>
    %272 = math.exp %271 : vector<8x32xf32>
    %cst_69 = arith.constant 1.000000e+00 : f32
    %273 = vector.broadcast %cst_69 : f32 to vector<8x32xf32>
    %274 = arith.addf %273, %272 : vector<8x32xf32>
    %275 = arith.divf %273, %274 : vector<8x32xf32>
    %276 = arith.mulf %267, %244 : vector<8x32xf32>
    %277 = arith.mulf %261, %269 : vector<8x32xf32>
    %278 = arith.addf %276, %277 : vector<8x32xf32>
    %279 = math.tanh %278 : vector<8x32xf32>
    %280 = arith.mulf %275, %279 : vector<8x32xf32>
    %281 = arith.truncf %280 : vector<8x32xf32> to vector<8x32xbf16>
    %c56_70 = arith.constant 56 : index
    %c0_71 = arith.constant 0 : index
    %282 = vector.load %arg16[%c56_70, %c0_71] : memref<64x32xbf16, #tpu.memory_space<vmem>>, vector<8x32xbf16>
    tpu.vector_store %arg16[%c56_70, %c0_71], %281 {strides = array<i32>} : memref<64x32xbf16, #tpu.memory_space<vmem>>, vector<8x32xbf16>,
    %c0_72 = arith.constant 0 : index
    %c0_73 = arith.constant 0 : index
    %c0_74 = arith.constant 0 : index
    %283 = vector.load %arg14[%c0_72, %c0_73, %c0_74] : memref<2x8x32xf32, #tpu.memory_space<vmem>>, vector<1x8x32xf32>
    %284 = vector.shape_cast %283 : vector<1x8x32xf32> to vector<8x32xf32>
    %285 = vector.shape_cast %280 : vector<8x32xf32> to vector<1x8x32xf32>
    tpu.vector_store %arg14[%c0_72, %c0_73, %c0_74], %285 {strides = array<i32>} : memref<2x8x32xf32, #tpu.memory_space<vmem>>, vector<1x8x32xf32>,
    %c0_75 = arith.constant 0 : index
    %c0_76 = arith.constant 0 : index
    %c0_77 = arith.constant 0 : index
    %286 = vector.load %arg15[%c0_75, %c0_76, %c0_77] : memref<2x8x32xf32, #tpu.memory_space<vmem>>, vector<1x8x32xf32>
    %287 = vector.shape_cast %286 : vector<1x8x32xf32> to vector<8x32xf32>
    %288 = vector.shape_cast %278 : vector<8x32xf32> to vector<1x8x32xf32>
    tpu.vector_store %arg15[%c0_75, %c0_76, %c0_77], %288 {strides = array<i32>} : memref<2x8x32xf32, #tpu.memory_space<vmem>>, vector<1x8x32xf32>,
    %c0_78 = arith.constant 0 : index
    %c0_79 = arith.constant 0 : index
    %289 = vector.load %arg16[%c0_78, %c0_79] : memref<64x32xbf16, #tpu.memory_space<vmem>>, vector<64x32xbf16>
    %c0_80 = arith.constant 0 : index
    %c0_81 = arith.constant 0 : index
    %290 = vector.load %arg4[%c0_80, %c0_81] : memref<32x128xbf16, #tpu.memory_space<vmem>>, vector<32x128xbf16>
    %cst_82 = arith.constant dense<0.000000e+00> : vector<64x128xf32>
    %291 = tpu.matmul %289, %290, %cst_82 {dimension_numbers = #tpu.dot_dimension_numbers<[1], [0], [0], [1], [0, 0, 1, 1], [], []>} : vector<64x32xbf16>, vector<32x128xbf16>, vector<64x128xf32> -> vector<64x128xf32>
    %292 = arith.truncf %291 : vector<64x128xf32> to vector<64x128xbf16>
    %c0_83 = arith.constant 0 : index
    %c0_84 = arith.constant 0 : index
    %293 = vector.load %arg17[%c0_83, %c0_84] : memref<64x128xbf16, #tpu.memory_space<vmem>>, vector<64x128xbf16>
    tpu.vector_store %arg17[%c0_83, %c0_84], %292 {strides = array<i32>} : memref<64x128xbf16, #tpu.memory_space<vmem>>, vector<64x128xbf16>,
    %c0_85 = arith.constant 0 : index
    %c0_86 = arith.constant 0 : index
    %294 = vector.load %arg5[%c0_85, %c0_86] : memref<32x128xbf16, #tpu.memory_space<vmem>>, vector<32x128xbf16>
    %c0_87 = arith.constant 0 : index
    %c0_88 = arith.constant 0 : index
    %295 = vector.load %arg6[%c0_87, %c0_88] : memref<1x128xf32, #tpu.memory_space<vmem>>, vector<1x128xf32>
    %c1 = arith.constant 1 : index
    %c0_89 = arith.constant 0 : index
    %c0_90 = arith.constant 0 : index
    %296 = vector.load %arg7[%c1, %c0_89, %c0_90] : memref<2x8x32xf32, #tpu.memory_space<vmem>>, vector<1x8x32xf32>
    %297 = vector.shape_cast %296 : vector<1x8x32xf32> to vector<8x32xf32>
    %c1_91 = arith.constant 1 : index
    %c0_92 = arith.constant 0 : index
    %c0_93 = arith.constant 0 : index
    %298 = vector.load %arg8[%c1_91, %c0_92, %c0_93] : memref<2x8x32xf32, #tpu.memory_space<vmem>>, vector<1x8x32xf32>
    %299 = vector.shape_cast %298 : vector<1x8x32xf32> to vector<8x32xf32>
    %c0_94 = arith.constant 0 : index
    %c0_95 = arith.constant 0 : index
    %300 = vector.load %arg17[%c0_94, %c0_95] : memref<64x128xbf16, #tpu.memory_space<vmem>>, vector<8x128xbf16>
    %301 = arith.extf %300 : vector<8x128xbf16> to vector<8x128xf32>
    %302 = vector.broadcast %295 : vector<1x128xf32> to vector<8x128xf32>
    %303 = arith.addf %301, %302 : vector<8x128xf32>
    %304 = arith.truncf %297 : vector<8x32xf32> to vector<8x32xbf16>
    %cst_96 = arith.constant dense<0.000000e+00> : vector<8x128xf32>
    %305 = tpu.matmul %304, %294, %cst_96 {dimension_numbers = #tpu.dot_dimension_numbers<[1], [0], [0], [1], [0, 0, 1, 1], [], []>} : vector<8x32xbf16>, vector<32x128xbf16>, vector<8x128xf32> -> vector<8x128xf32>
    %306 = arith.addf %303, %305 : vector<8x128xf32>
    %307 = vector.extract_strided_slice %306 {offsets = [0, 0], sizes = [8, 32], strides = [1, 1]} : vector<8x128xf32> to vector<8x32xf32>
    %308 = arith.negf %307 : vector<8x32xf32>
    %309 = math.exp %308 : vector<8x32xf32>
    %cst_97 = arith.constant 1.000000e+00 : f32
    %310 = vector.broadcast %cst_97 : f32 to vector<8x32xf32>
    %311 = arith.addf %310, %309 : vector<8x32xf32>
    %312 = arith.divf %310, %311 : vector<8x32xf32>
    %313 = vector.extract_strided_slice %306 {offsets = [0, 32], sizes = [8, 32], strides = [1, 1]} : vector<8x128xf32> to vector<8x32xf32>
    %314 = arith.negf %313 : vector<8x32xf32>
    %315 = math.exp %314 : vector<8x32xf32>
    %cst_98 = arith.constant 1.000000e+00 : f32
    %316 = vector.broadcast %cst_98 : f32 to vector<8x32xf32>
    %317 = arith.addf %316, %315 : vector<8x32xf32>
    %318 = arith.divf %316, %317 : vector<8x32xf32>
    %319 = vector.extract_strided_slice %306 {offsets = [0, 64], sizes = [8, 32], strides = [1, 1]} : vector<8x128xf32> to vector<8x32xf32>
    %320 = math.tanh %319 : vector<8x32xf32>
    %321 = vector.extract_strided_slice %306 {offsets = [0, 96], sizes = [8, 32], strides = [1, 1]} : vector<8x128xf32> to vector<8x32xf32>
    %322 = arith.negf %321 : vector<8x32xf32>
    %323 = math.exp %322 : vector<8x32xf32>
    %cst_99 = arith.constant 1.000000e+00 : f32
    %324 = vector.broadcast %cst_99 : f32 to vector<8x32xf32>
    %325 = arith.addf %324, %323 : vector<8x32xf32>
    %326 = arith.divf %324, %325 : vector<8x32xf32>
    %327 = arith.mulf %318, %299 : vector<8x32xf32>
    %328 = arith.mulf %312, %320 : vector<8x32xf32>
    %329 = arith.addf %327, %328 : vector<8x32xf32>
    %330 = math.tanh %329 : vector<8x32xf32>
    %331 = arith.mulf %326, %330 : vector<8x32xf32>
    %c8_100 = arith.constant 8 : index
    %c0_101 = arith.constant 0 : index
    %332 = vector.load %arg17[%c8_100, %c0_101] : memref<64x128xbf16, #tpu.memory_space<vmem>>, vector<8x128xbf16>
    %333 = arith.extf %332 : vector<8x128xbf16> to vector<8x128xf32>
    %334 = vector.broadcast %295 : vector<1x128xf32> to vector<8x128xf32>
    %335 = arith.addf %333, %334 : vector<8x128xf32>
    %336 = arith.truncf %331 : vector<8x32xf32> to vector<8x32xbf16>
    %cst_102 = arith.constant dense<0.000000e+00> : vector<8x128xf32>
    %337 = tpu.matmul %336, %294, %cst_102 {dimension_numbers = #tpu.dot_dimension_numbers<[1], [0], [0], [1], [0, 0, 1, 1], [], []>} : vector<8x32xbf16>, vector<32x128xbf16>, vector<8x128xf32> -> vector<8x128xf32>
    %338 = arith.addf %335, %337 : vector<8x128xf32>
    %339 = vector.extract_strided_slice %338 {offsets = [0, 0], sizes = [8, 32], strides = [1, 1]} : vector<8x128xf32> to vector<8x32xf32>
    %340 = arith.negf %339 : vector<8x32xf32>
    %341 = math.exp %340 : vector<8x32xf32>
    %cst_103 = arith.constant 1.000000e+00 : f32
    %342 = vector.broadcast %cst_103 : f32 to vector<8x32xf32>
    %343 = arith.addf %342, %341 : vector<8x32xf32>
    %344 = arith.divf %342, %343 : vector<8x32xf32>
    %345 = vector.extract_strided_slice %338 {offsets = [0, 32], sizes = [8, 32], strides = [1, 1]} : vector<8x128xf32> to vector<8x32xf32>
    %346 = arith.negf %345 : vector<8x32xf32>
    %347 = math.exp %346 : vector<8x32xf32>
    %cst_104 = arith.constant 1.000000e+00 : f32
    %348 = vector.broadcast %cst_104 : f32 to vector<8x32xf32>
    %349 = arith.addf %348, %347 : vector<8x32xf32>
    %350 = arith.divf %348, %349 : vector<8x32xf32>
    %351 = vector.extract_strided_slice %338 {offsets = [0, 64], sizes = [8, 32], strides = [1, 1]} : vector<8x128xf32> to vector<8x32xf32>
    %352 = math.tanh %351 : vector<8x32xf32>
    %353 = vector.extract_strided_slice %338 {offsets = [0, 96], sizes = [8, 32], strides = [1, 1]} : vector<8x128xf32> to vector<8x32xf32>
    %354 = arith.negf %353 : vector<8x32xf32>
    %355 = math.exp %354 : vector<8x32xf32>
    %cst_105 = arith.constant 1.000000e+00 : f32
    %356 = vector.broadcast %cst_105 : f32 to vector<8x32xf32>
    %357 = arith.addf %356, %355 : vector<8x32xf32>
    %358 = arith.divf %356, %357 : vector<8x32xf32>
    %359 = arith.mulf %350, %329 : vector<8x32xf32>
    %360 = arith.mulf %344, %352 : vector<8x32xf32>
    %361 = arith.addf %359, %360 : vector<8x32xf32>
    %362 = math.tanh %361 : vector<8x32xf32>
    %363 = arith.mulf %358, %362 : vector<8x32xf32>
    %c16_106 = arith.constant 16 : index
    %c0_107 = arith.constant 0 : index
    %364 = vector.load %arg17[%c16_106, %c0_107] : memref<64x128xbf16, #tpu.memory_space<vmem>>, vector<8x128xbf16>
    %365 = arith.extf %364 : vector<8x128xbf16> to vector<8x128xf32>
    %366 = vector.broadcast %295 : vector<1x128xf32> to vector<8x128xf32>
    %367 = arith.addf %365, %366 : vector<8x128xf32>
    %368 = arith.truncf %363 : vector<8x32xf32> to vector<8x32xbf16>
    %cst_108 = arith.constant dense<0.000000e+00> : vector<8x128xf32>
    %369 = tpu.matmul %368, %294, %cst_108 {dimension_numbers = #tpu.dot_dimension_numbers<[1], [0], [0], [1], [0, 0, 1, 1], [], []>} : vector<8x32xbf16>, vector<32x128xbf16>, vector<8x128xf32> -> vector<8x128xf32>
    %370 = arith.addf %367, %369 : vector<8x128xf32>
    %371 = vector.extract_strided_slice %370 {offsets = [0, 0], sizes = [8, 32], strides = [1, 1]} : vector<8x128xf32> to vector<8x32xf32>
    %372 = arith.negf %371 : vector<8x32xf32>
    %373 = math.exp %372 : vector<8x32xf32>
    %cst_109 = arith.constant 1.000000e+00 : f32
    %374 = vector.broadcast %cst_109 : f32 to vector<8x32xf32>
    %375 = arith.addf %374, %373 : vector<8x32xf32>
    %376 = arith.divf %374, %375 : vector<8x32xf32>
    %377 = vector.extract_strided_slice %370 {offsets = [0, 32], sizes = [8, 32], strides = [1, 1]} : vector<8x128xf32> to vector<8x32xf32>
    %378 = arith.negf %377 : vector<8x32xf32>
    %379 = math.exp %378 : vector<8x32xf32>
    %cst_110 = arith.constant 1.000000e+00 : f32
    %380 = vector.broadcast %cst_110 : f32 to vector<8x32xf32>
    %381 = arith.addf %380, %379 : vector<8x32xf32>
    %382 = arith.divf %380, %381 : vector<8x32xf32>
    %383 = vector.extract_strided_slice %370 {offsets = [0, 64], sizes = [8, 32], strides = [1, 1]} : vector<8x128xf32> to vector<8x32xf32>
    %384 = math.tanh %383 : vector<8x32xf32>
    %385 = vector.extract_strided_slice %370 {offsets = [0, 96], sizes = [8, 32], strides = [1, 1]} : vector<8x128xf32> to vector<8x32xf32>
    %386 = arith.negf %385 : vector<8x32xf32>
    %387 = math.exp %386 : vector<8x32xf32>
    %cst_111 = arith.constant 1.000000e+00 : f32
    %388 = vector.broadcast %cst_111 : f32 to vector<8x32xf32>
    %389 = arith.addf %388, %387 : vector<8x32xf32>
    %390 = arith.divf %388, %389 : vector<8x32xf32>
    %391 = arith.mulf %382, %361 : vector<8x32xf32>
    %392 = arith.mulf %376, %384 : vector<8x32xf32>
    %393 = arith.addf %391, %392 : vector<8x32xf32>
    %394 = math.tanh %393 : vector<8x32xf32>
    %395 = arith.mulf %390, %394 : vector<8x32xf32>
    %c24_112 = arith.constant 24 : index
    %c0_113 = arith.constant 0 : index
    %396 = vector.load %arg17[%c24_112, %c0_113] : memref<64x128xbf16, #tpu.memory_space<vmem>>, vector<8x128xbf16>
    %397 = arith.extf %396 : vector<8x128xbf16> to vector<8x128xf32>
    %398 = vector.broadcast %295 : vector<1x128xf32> to vector<8x128xf32>
    %399 = arith.addf %397, %398 : vector<8x128xf32>
    %400 = arith.truncf %395 : vector<8x32xf32> to vector<8x32xbf16>
    %cst_114 = arith.constant dense<0.000000e+00> : vector<8x128xf32>
    %401 = tpu.matmul %400, %294, %cst_114 {dimension_numbers = #tpu.dot_dimension_numbers<[1], [0], [0], [1], [0, 0, 1, 1], [], []>} : vector<8x32xbf16>, vector<32x128xbf16>, vector<8x128xf32> -> vector<8x128xf32>
    %402 = arith.addf %399, %401 : vector<8x128xf32>
    %403 = vector.extract_strided_slice %402 {offsets = [0, 0], sizes = [8, 32], strides = [1, 1]} : vector<8x128xf32> to vector<8x32xf32>
    %404 = arith.negf %403 : vector<8x32xf32>
    %405 = math.exp %404 : vector<8x32xf32>
    %cst_115 = arith.constant 1.000000e+00 : f32
    %406 = vector.broadcast %cst_115 : f32 to vector<8x32xf32>
    %407 = arith.addf %406, %405 : vector<8x32xf32>
    %408 = arith.divf %406, %407 : vector<8x32xf32>
    %409 = vector.extract_strided_slice %402 {offsets = [0, 32], sizes = [8, 32], strides = [1, 1]} : vector<8x128xf32> to vector<8x32xf32>
    %410 = arith.negf %409 : vector<8x32xf32>
    %411 = math.exp %410 : vector<8x32xf32>
    %cst_116 = arith.constant 1.000000e+00 : f32
    %412 = vector.broadcast %cst_116 : f32 to vector<8x32xf32>
    %413 = arith.addf %412, %411 : vector<8x32xf32>
    %414 = arith.divf %412, %413 : vector<8x32xf32>
    %415 = vector.extract_strided_slice %402 {offsets = [0, 64], sizes = [8, 32], strides = [1, 1]} : vector<8x128xf32> to vector<8x32xf32>
    %416 = math.tanh %415 : vector<8x32xf32>
    %417 = vector.extract_strided_slice %402 {offsets = [0, 96], sizes = [8, 32], strides = [1, 1]} : vector<8x128xf32> to vector<8x32xf32>
    %418 = arith.negf %417 : vector<8x32xf32>
    %419 = math.exp %418 : vector<8x32xf32>
    %cst_117 = arith.constant 1.000000e+00 : f32
    %420 = vector.broadcast %cst_117 : f32 to vector<8x32xf32>
    %421 = arith.addf %420, %419 : vector<8x32xf32>
    %422 = arith.divf %420, %421 : vector<8x32xf32>
    %423 = arith.mulf %414, %393 : vector<8x32xf32>
    %424 = arith.mulf %408, %416 : vector<8x32xf32>
    %425 = arith.addf %423, %424 : vector<8x32xf32>
    %426 = math.tanh %425 : vector<8x32xf32>
    %427 = arith.mulf %422, %426 : vector<8x32xf32>
    %c32_118 = arith.constant 32 : index
    %c0_119 = arith.constant 0 : index
    %428 = vector.load %arg17[%c32_118, %c0_119] : memref<64x128xbf16, #tpu.memory_space<vmem>>, vector<8x128xbf16>
    %429 = arith.extf %428 : vector<8x128xbf16> to vector<8x128xf32>
    %430 = vector.broadcast %295 : vector<1x128xf32> to vector<8x128xf32>
    %431 = arith.addf %429, %430 : vector<8x128xf32>
    %432 = arith.truncf %427 : vector<8x32xf32> to vector<8x32xbf16>
    %cst_120 = arith.constant dense<0.000000e+00> : vector<8x128xf32>
    %433 = tpu.matmul %432, %294, %cst_120 {dimension_numbers = #tpu.dot_dimension_numbers<[1], [0], [0], [1], [0, 0, 1, 1], [], []>} : vector<8x32xbf16>, vector<32x128xbf16>, vector<8x128xf32> -> vector<8x128xf32>
    %434 = arith.addf %431, %433 : vector<8x128xf32>
    %435 = vector.extract_strided_slice %434 {offsets = [0, 0], sizes = [8, 32], strides = [1, 1]} : vector<8x128xf32> to vector<8x32xf32>
    %436 = arith.negf %435 : vector<8x32xf32>
    %437 = math.exp %436 : vector<8x32xf32>
    %cst_121 = arith.constant 1.000000e+00 : f32
    %438 = vector.broadcast %cst_121 : f32 to vector<8x32xf32>
    %439 = arith.addf %438, %437 : vector<8x32xf32>
    %440 = arith.divf %438, %439 : vector<8x32xf32>
    %441 = vector.extract_strided_slice %434 {offsets = [0, 32], sizes = [8, 32], strides = [1, 1]} : vector<8x128xf32> to vector<8x32xf32>
    %442 = arith.negf %441 : vector<8x32xf32>
    %443 = math.exp %442 : vector<8x32xf32>
    %cst_122 = arith.constant 1.000000e+00 : f32
    %444 = vector.broadcast %cst_122 : f32 to vector<8x32xf32>
    %445 = arith.addf %444, %443 : vector<8x32xf32>
    %446 = arith.divf %444, %445 : vector<8x32xf32>
    %447 = vector.extract_strided_slice %434 {offsets = [0, 64], sizes = [8, 32], strides = [1, 1]} : vector<8x128xf32> to vector<8x32xf32>
    %448 = math.tanh %447 : vector<8x32xf32>
    %449 = vector.extract_strided_slice %434 {offsets = [0, 96], sizes = [8, 32], strides = [1, 1]} : vector<8x128xf32> to vector<8x32xf32>
    %450 = arith.negf %449 : vector<8x32xf32>
    %451 = math.exp %450 : vector<8x32xf32>
    %cst_123 = arith.constant 1.000000e+00 : f32
    %452 = vector.broadcast %cst_123 : f32 to vector<8x32xf32>
    %453 = arith.addf %452, %451 : vector<8x32xf32>
    %454 = arith.divf %452, %453 : vector<8x32xf32>
    %455 = arith.mulf %446, %425 : vector<8x32xf32>
    %456 = arith.mulf %440, %448 : vector<8x32xf32>
    %457 = arith.addf %455, %456 : vector<8x32xf32>
    %458 = math.tanh %457 : vector<8x32xf32>
    %459 = arith.mulf %454, %458 : vector<8x32xf32>
    %c40_124 = arith.constant 40 : index
    %c0_125 = arith.constant 0 : index
    %460 = vector.load %arg17[%c40_124, %c0_125] : memref<64x128xbf16, #tpu.memory_space<vmem>>, vector<8x128xbf16>
    %461 = arith.extf %460 : vector<8x128xbf16> to vector<8x128xf32>
    %462 = vector.broadcast %295 : vector<1x128xf32> to vector<8x128xf32>
    %463 = arith.addf %461, %462 : vector<8x128xf32>
    %464 = arith.truncf %459 : vector<8x32xf32> to vector<8x32xbf16>
    %cst_126 = arith.constant dense<0.000000e+00> : vector<8x128xf32>
    %465 = tpu.matmul %464, %294, %cst_126 {dimension_numbers = #tpu.dot_dimension_numbers<[1], [0], [0], [1], [0, 0, 1, 1], [], []>} : vector<8x32xbf16>, vector<32x128xbf16>, vector<8x128xf32> -> vector<8x128xf32>
    %466 = arith.addf %463, %465 : vector<8x128xf32>
    %467 = vector.extract_strided_slice %466 {offsets = [0, 0], sizes = [8, 32], strides = [1, 1]} : vector<8x128xf32> to vector<8x32xf32>
    %468 = arith.negf %467 : vector<8x32xf32>
    %469 = math.exp %468 : vector<8x32xf32>
    %cst_127 = arith.constant 1.000000e+00 : f32
    %470 = vector.broadcast %cst_127 : f32 to vector<8x32xf32>
    %471 = arith.addf %470, %469 : vector<8x32xf32>
    %472 = arith.divf %470, %471 : vector<8x32xf32>
    %473 = vector.extract_strided_slice %466 {offsets = [0, 32], sizes = [8, 32], strides = [1, 1]} : vector<8x128xf32> to vector<8x32xf32>
    %474 = arith.negf %473 : vector<8x32xf32>
    %475 = math.exp %474 : vector<8x32xf32>
    %cst_128 = arith.constant 1.000000e+00 : f32
    %476 = vector.broadcast %cst_128 : f32 to vector<8x32xf32>
    %477 = arith.addf %476, %475 : vector<8x32xf32>
    %478 = arith.divf %476, %477 : vector<8x32xf32>
    %479 = vector.extract_strided_slice %466 {offsets = [0, 64], sizes = [8, 32], strides = [1, 1]} : vector<8x128xf32> to vector<8x32xf32>
    %480 = math.tanh %479 : vector<8x32xf32>
    %481 = vector.extract_strided_slice %466 {offsets = [0, 96], sizes = [8, 32], strides = [1, 1]} : vector<8x128xf32> to vector<8x32xf32>
    %482 = arith.negf %481 : vector<8x32xf32>
    %483 = math.exp %482 : vector<8x32xf32>
    %cst_129 = arith.constant 1.000000e+00 : f32
    %484 = vector.broadcast %cst_129 : f32 to vector<8x32xf32>
    %485 = arith.addf %484, %483 : vector<8x32xf32>
    %486 = arith.divf %484, %485 : vector<8x32xf32>
    %487 = arith.mulf %478, %457 : vector<8x32xf32>
    %488 = arith.mulf %472, %480 : vector<8x32xf32>
    %489 = arith.addf %487, %488 : vector<8x32xf32>
    %490 = math.tanh %489 : vector<8x32xf32>
    %491 = arith.mulf %486, %490 : vector<8x32xf32>
    %c48_130 = arith.constant 48 : index
    %c0_131 = arith.constant 0 : index
    %492 = vector.load %arg17[%c48_130, %c0_131] : memref<64x128xbf16, #tpu.memory_space<vmem>>, vector<8x128xbf16>
    %493 = arith.extf %492 : vector<8x128xbf16> to vector<8x128xf32>
    %494 = vector.broadcast %295 : vector<1x128xf32> to vector<8x128xf32>
    %495 = arith.addf %493, %494 : vector<8x128xf32>
    %496 = arith.truncf %491 : vector<8x32xf32> to vector<8x32xbf16>
    %cst_132 = arith.constant dense<0.000000e+00> : vector<8x128xf32>
    %497 = tpu.matmul %496, %294, %cst_132 {dimension_numbers = #tpu.dot_dimension_numbers<[1], [0], [0], [1], [0, 0, 1, 1], [], []>} : vector<8x32xbf16>, vector<32x128xbf16>, vector<8x128xf32> -> vector<8x128xf32>
    %498 = arith.addf %495, %497 : vector<8x128xf32>
    %499 = vector.extract_strided_slice %498 {offsets = [0, 0], sizes = [8, 32], strides = [1, 1]} : vector<8x128xf32> to vector<8x32xf32>
    %500 = arith.negf %499 : vector<8x32xf32>
    %501 = math.exp %500 : vector<8x32xf32>
    %cst_133 = arith.constant 1.000000e+00 : f32
    %502 = vector.broadcast %cst_133 : f32 to vector<8x32xf32>
    %503 = arith.addf %502, %501 : vector<8x32xf32>
    %504 = arith.divf %502, %503 : vector<8x32xf32>
    %505 = vector.extract_strided_slice %498 {offsets = [0, 32], sizes = [8, 32], strides = [1, 1]} : vector<8x128xf32> to vector<8x32xf32>
    %506 = arith.negf %505 : vector<8x32xf32>
    %507 = math.exp %506 : vector<8x32xf32>
    %cst_134 = arith.constant 1.000000e+00 : f32
    %508 = vector.broadcast %cst_134 : f32 to vector<8x32xf32>
    %509 = arith.addf %508, %507 : vector<8x32xf32>
    %510 = arith.divf %508, %509 : vector<8x32xf32>
    %511 = vector.extract_strided_slice %498 {offsets = [0, 64], sizes = [8, 32], strides = [1, 1]} : vector<8x128xf32> to vector<8x32xf32>
    %512 = math.tanh %511 : vector<8x32xf32>
    %513 = vector.extract_strided_slice %498 {offsets = [0, 96], sizes = [8, 32], strides = [1, 1]} : vector<8x128xf32> to vector<8x32xf32>
    %514 = arith.negf %513 : vector<8x32xf32>
    %515 = math.exp %514 : vector<8x32xf32>
    %cst_135 = arith.constant 1.000000e+00 : f32
    %516 = vector.broadcast %cst_135 : f32 to vector<8x32xf32>
    %517 = arith.addf %516, %515 : vector<8x32xf32>
    %518 = arith.divf %516, %517 : vector<8x32xf32>
    %519 = arith.mulf %510, %489 : vector<8x32xf32>
    %520 = arith.mulf %504, %512 : vector<8x32xf32>
    %521 = arith.addf %519, %520 : vector<8x32xf32>
    %522 = math.tanh %521 : vector<8x32xf32>
    %523 = arith.mulf %518, %522 : vector<8x32xf32>
    %c56_136 = arith.constant 56 : index
    %c0_137 = arith.constant 0 : index
    %524 = vector.load %arg17[%c56_136, %c0_137] : memref<64x128xbf16, #tpu.memory_space<vmem>>, vector<8x128xbf16>
    %525 = arith.extf %524 : vector<8x128xbf16> to vector<8x128xf32>
    %526 = vector.broadcast %295 : vector<1x128xf32> to vector<8x128xf32>
    %527 = arith.addf %525, %526 : vector<8x128xf32>
    %528 = arith.truncf %523 : vector<8x32xf32> to vector<8x32xbf16>
    %cst_138 = arith.constant dense<0.000000e+00> : vector<8x128xf32>
    %529 = tpu.matmul %528, %294, %cst_138 {dimension_numbers = #tpu.dot_dimension_numbers<[1], [0], [0], [1], [0, 0, 1, 1], [], []>} : vector<8x32xbf16>, vector<32x128xbf16>, vector<8x128xf32> -> vector<8x128xf32>
    %530 = arith.addf %527, %529 : vector<8x128xf32>
    %531 = vector.extract_strided_slice %530 {offsets = [0, 0], sizes = [8, 32], strides = [1, 1]} : vector<8x128xf32> to vector<8x32xf32>
    %532 = arith.negf %531 : vector<8x32xf32>
    %533 = math.exp %532 : vector<8x32xf32>
    %cst_139 = arith.constant 1.000000e+00 : f32
    %534 = vector.broadcast %cst_139 : f32 to vector<8x32xf32>
    %535 = arith.addf %534, %533 : vector<8x32xf32>
    %536 = arith.divf %534, %535 : vector<8x32xf32>
    %537 = vector.extract_strided_slice %530 {offsets = [0, 32], sizes = [8, 32], strides = [1, 1]} : vector<8x128xf32> to vector<8x32xf32>
    %538 = arith.negf %537 : vector<8x32xf32>
    %539 = math.exp %538 : vector<8x32xf32>
    %cst_140 = arith.constant 1.000000e+00 : f32
    %540 = vector.broadcast %cst_140 : f32 to vector<8x32xf32>
    %541 = arith.addf %540, %539 : vector<8x32xf32>
    %542 = arith.divf %540, %541 : vector<8x32xf32>
    %543 = vector.extract_strided_slice %530 {offsets = [0, 64], sizes = [8, 32], strides = [1, 1]} : vector<8x128xf32> to vector<8x32xf32>
    %544 = math.tanh %543 : vector<8x32xf32>
    %545 = vector.extract_strided_slice %530 {offsets = [0, 96], sizes = [8, 32], strides = [1, 1]} : vector<8x128xf32> to vector<8x32xf32>
    %546 = arith.negf %545 : vector<8x32xf32>
    %547 = math.exp %546 : vector<8x32xf32>
    %cst_141 = arith.constant 1.000000e+00 : f32
    %548 = vector.broadcast %cst_141 : f32 to vector<8x32xf32>
    %549 = arith.addf %548, %547 : vector<8x32xf32>
    %550 = arith.divf %548, %549 : vector<8x32xf32>
    %551 = arith.mulf %542, %521 : vector<8x32xf32>
    %552 = arith.mulf %536, %544 : vector<8x32xf32>
    %553 = arith.addf %551, %552 : vector<8x32xf32>
    %554 = math.tanh %553 : vector<8x32xf32>
    %555 = arith.mulf %550, %554 : vector<8x32xf32>
    %c1_142 = arith.constant 1 : index
    %c0_143 = arith.constant 0 : index
    %c0_144 = arith.constant 0 : index
    %556 = vector.load %arg14[%c1_142, %c0_143, %c0_144] : memref<2x8x32xf32, #tpu.memory_space<vmem>>, vector<1x8x32xf32>
    %557 = vector.shape_cast %556 : vector<1x8x32xf32> to vector<8x32xf32>
    %558 = vector.shape_cast %555 : vector<8x32xf32> to vector<1x8x32xf32>
    tpu.vector_store %arg14[%c1_142, %c0_143, %c0_144], %558 {strides = array<i32>} : memref<2x8x32xf32, #tpu.memory_space<vmem>>, vector<1x8x32xf32>,
    %c1_145 = arith.constant 1 : index
    %c0_146 = arith.constant 0 : index
    %c0_147 = arith.constant 0 : index
    %559 = vector.load %arg15[%c1_145, %c0_146, %c0_147] : memref<2x8x32xf32, #tpu.memory_space<vmem>>, vector<1x8x32xf32>
    %560 = vector.shape_cast %559 : vector<1x8x32xf32> to vector<8x32xf32>
    %561 = vector.shape_cast %553 : vector<8x32xf32> to vector<1x8x32xf32>
    tpu.vector_store %arg15[%c1_145, %c0_146, %c0_147], %561 {strides = array<i32>} : memref<2x8x32xf32, #tpu.memory_space<vmem>>, vector<1x8x32xf32>,
    %562 = arith.truncf %555 : vector<8x32xf32> to vector<8x32xbf16>
    %c0_148 = arith.constant 0 : index
    %c0_149 = arith.constant 0 : index
    %563 = vector.load %arg9[%c0_148, %c0_149] : memref<32x4xbf16, #tpu.memory_space<vmem>>, vector<32x4xbf16>
    %cst_150 = arith.constant dense<0.000000e+00> : vector<8x4xf32>
    %564 = tpu.matmul %562, %563, %cst_150 {dimension_numbers = #tpu.dot_dimension_numbers<[1], [0], [0], [1], [0, 0, 1, 1], [], []>} : vector<8x32xbf16>, vector<32x4xbf16>, vector<8x4xf32> -> vector<8x4xf32>
    %c0_151 = arith.constant 0 : index
    %c0_152 = arith.constant 0 : index
    %565 = vector.load %arg10[%c0_151, %c0_152] : memref<1x4xf32, #tpu.memory_space<vmem>>, vector<1x4xf32>
    %566 = vector.broadcast %565 : vector<1x4xf32> to vector<8x4xf32>
    %567 = arith.addf %564, %566 : vector<8x4xf32>
    %cst_153 = arith.constant dense<0xFF800000> : vector<8xf32>
    %568 = vector.multi_reduction <maximumf>, %567, %cst_153 [1] : vector<8x4xf32> to vector<8xf32>
    %569 = vector.shape_cast %568 : vector<8xf32> to vector<8x1xf32>
    %570 = vector.broadcast %569 : vector<8x1xf32> to vector<8x4xf32>
    %571 = arith.subf %567, %570 : vector<8x4xf32>
    %572 = math.exp %571 : vector<8x4xf32>
    %cst_154 = arith.constant dense<0.000000e+00> : vector<8xf32>
    %573 = vector.multi_reduction <add>, %572, %cst_154 [1] : vector<8x4xf32> to vector<8xf32>
    %574 = vector.shape_cast %573 : vector<8xf32> to vector<8x1xf32>
    %575 = math.log %574 : vector<8x1xf32>
    %576 = arith.addf %575, %569 : vector<8x1xf32>
    %577 = vector.broadcast %576 : vector<8x1xf32> to vector<8x4xf32>
    %578 = arith.subf %567, %577 : vector<8x4xf32>
    %c0_155 = arith.constant 0 : index
    %c0_156 = arith.constant 0 : index
    %579 = vector.load %arg12[%c0_155, %c0_156] : memref<8x4xf32, #tpu.memory_space<vmem>>, vector<8x4xf32>
    tpu.vector_store %arg12[%c0_155, %c0_156], %578 {strides = array<i32>} : memref<8x4xf32, #tpu.memory_space<vmem>>, vector<8x4xf32>,
    %580 = tpu.iota {dimensions = array<i32: 0>} : vector<8x4xi32>
    %581 = tpu.iota {dimensions = array<i32: 1>} : vector<8x4xi32>
    %cst_157 = arith.constant 0.000000e+00 : f32
    %582 = vector.broadcast %cst_157 : f32 to vector<8x4xf32>
    %c0_i32 = arith.constant 0 : i32
    %583 = vector.broadcast %c0_i32 : i32 to vector<8x4xi32>
    %584 = arith.cmpi eq, %580, %583 : vector<8x4xi32>
    %c0_158 = arith.constant 0 : index
    %585 = memref.load %arg11[%c0_158] : memref<8xi32, #tpu.memory_space<smem>>
    %586 = vector.broadcast %585 : i32 to vector<8x4xi32>
    %587 = arith.cmpi eq, %581, %586 : vector<8x4xi32>
    %588 = arith.andi %584, %587 : vector<8x4xi1>
    %cst_159 = arith.constant 1.000000e+00 : f32
    %589 = vector.broadcast %cst_159 : f32 to vector<8x4xf32>
    %590 = arith.select %588, %589, %582 : vector<8x4xi1>, vector<8x4xf32>
    %c1_i32 = arith.constant 1 : i32
    %591 = vector.broadcast %c1_i32 : i32 to vector<8x4xi32>
    %592 = arith.cmpi eq, %580, %591 : vector<8x4xi32>
    %c1_160 = arith.constant 1 : index
    %593 = memref.load %arg11[%c1_160] : memref<8xi32, #tpu.memory_space<smem>>
    %594 = vector.broadcast %593 : i32 to vector<8x4xi32>
    %595 = arith.cmpi eq, %581, %594 : vector<8x4xi32>
    %596 = arith.andi %592, %595 : vector<8x4xi1>
    %cst_161 = arith.constant 1.000000e+00 : f32
    %597 = vector.broadcast %cst_161 : f32 to vector<8x4xf32>
    %598 = arith.select %596, %597, %590 : vector<8x4xi1>, vector<8x4xf32>
    %599 = arith.mulf %578, %598 : vector<8x4xf32>
    %600 = vector.shape_cast %599 : vector<8x4xf32> to vector<1x8x4xf32>
    %cst_162 = arith.constant dense<0.000000e+00> : vector<1xf32>
    %601 = vector.multi_reduction <add>, %600, %cst_162 [1, 2] : vector<1x8x4xf32> to vector<1xf32>
    %602 = vector.shape_cast %601 : vector<1xf32> to vector<1x1x1xf32>
    %603 = vector.extract %602[0, 0, 0] : f32 from vector<1x1x1xf32>
    %cst_163 = arith.constant 0.000000e+00 : f32
    %604 = arith.subf %cst_163, %603 : f32
    %cst_164 = arith.constant 2.000000e+00 : f32
    %605 = arith.divf %604, %cst_164 : f32
    %606 = vector.broadcast %605 : f32 to vector<1x1xf32>
    %c0_165 = arith.constant 0 : index
    %c0_166 = arith.constant 0 : index
    %607 = vector.load %arg13[%c0_165, %c0_166] : memref<1x1xf32, #tpu.memory_space<vmem>>, vector<1x1xf32>
    tpu.vector_store %arg13[%c0_165, %c0_166], %606 {strides = array<i32>} : memref<1x1xf32, #tpu.memory_space<vmem>>, vector<1x1xf32>,
    return
  }
}

</mosaic_0001>

<llo_original>
// kernel: forward.1
$region0: #{forward.1}
  #allocation0 [shape = 'u32[]', space=smem, size = 0x4, offset = 0x4, fixed_abs, tag = 'smem constant byte address 0x4 - core index']
  #allocation1 [shape = 'u32[144,128]{1,0:T(1,128)}', space=vmem, size = 0x12000, scoped, tag = 'internal scratch']
  #allocation2 [shape = 'bf16[64,32]{1,0:T(16,128)(2,1)}', space=vmem, size = 0x4000, scoped, tag = 'scratch operand']
  #allocation3 [shape = 'bf16[64,128]{1,0:T(16,128)(2,1)}', space=vmem, size = 0x4000, scoped, tag = 'scratch operand']
  %s0 = inlined_call_operand.vmem [shape: bf16[64,32], index: 0, kind: input, shape index: {}]
  %s1 = inlined_call_operand.vmem [shape: bf16[32,128], index: 1, kind: input, shape index: {}]
  %s2 = inlined_call_operand.vmem [shape: bf16[32,128], index: 2, kind: input, shape index: {}]
  %s3 = inlined_call_operand.vmem [shape: f32[1,128], index: 3, kind: input, shape index: {}]
  %s4 = inlined_call_operand.vmem [shape: bf16[32,128], index: 4, kind: input, shape index: {}]
  %s5 = inlined_call_operand.vmem [shape: bf16[32,128], index: 5, kind: input, shape index: {}]
  %s6 = inlined_call_operand.vmem [shape: f32[1,128], index: 6, kind: input, shape index: {}]
  %s7 = inlined_call_operand.vmem [shape: f32[2,8,32], index: 7, kind: input, shape index: {}]
  %s8 = inlined_call_operand.vmem [shape: f32[2,8,32], index: 8, kind: input, shape index: {}]
  %s9 = inlined_call_operand.vmem [shape: bf16[32,4], index: 9, kind: input, shape index: {}]
  %s10 = inlined_call_operand.vmem [shape: f32[1,4], index: 10, kind: input, shape index: {}]
  %s11 = inlined_call_operand.vmem [shape: s32[8], index: 11, kind: input, shape index: {}]
  %s12 = inlined_call_operand.vmem [shape: f32[8,4], index: 12, kind: output, shape index: {0}]
  %s13 = inlined_call_operand.hbm [shape: f32[1,1], index: 13, kind: output, shape index: {1}]
  %s14 = inlined_call_operand.vmem [shape: f32[2,8,32], index: 14, kind: output, shape index: {2}]
  %s15 = inlined_call_operand.vmem [shape: f32[2,8,32], index: 15, kind: output, shape index: {3}]
  %16 = xla_tuple %s12, %s13, %s14, %s15
  %s17 = sld [smem:[#allocation0]]
  $region86: #{forward.1} parent=0
    _
  %s19 = ssub.s32 1, %s17
  %s20 = scalar_select 0, %s19, %s17
  $region1: #{forward.1} parent=0
    #allocation4 [shape = 'u8[512]{0}', space=smem, size = 0x200, scoped, tag = 'input window, operand 11, single buffered']
    #allocation5 [shape = 's32[1]{0}', space=sflag, size = 0x4, scoped, tag = 'scoped memory for forward.1']
    #allocation6 [shape = 's32[1]{0}', space=sflag, size = 0x4, scoped, tag = 'scoped memory for forward.1']
    #allocation7 [shape = 'u8[512]{0}', space=vmem, size = 0x400, scoped, tag = 'output window, operand 1, single buffered']
    %21 = vsyncpa [#allocation6], 0
    %22 = vsyncpa [#allocation5], 0
    // Predicated region
    $region2: #{forward.1} parent=1 // pred_check
      _
    $region3: #{forward.1} parent=1 // pred_check_branch
      %24 = sbr.rel (0) target = $region5
    $region4: #{forward.1} parent=1 // pred_region
      _
    $region5: #{forward.1} parent=1 // pred_fallthru
      _
    // Predicated region
    $region6: #{forward.1} parent=1 // pred_check
      _
    $region7: #{forward.1} parent=1 // pred_check_branch
      %26 = sbr.rel (0) target = $region9
    $region8: #{forward.1} parent=1 // pred_region
      _
    $region9: #{forward.1} parent=1 // pred_fallthru
      _
    // Predicated region
    $region10: #{forward.1} parent=1 // pred_check
      _
    $region11: #{forward.1} parent=1 // pred_check_branch
      %28 = sbr.rel (0) target = $region13
    $region12: #{forward.1} parent=1 // pred_region
      _
    $region13: #{forward.1} parent=1 // pred_fallthru
      _
    // Predicated region
    $region14: #{forward.1} parent=1 // pred_check
      _
    $region15: #{forward.1} parent=1 // pred_check_branch
      %30 = sbr.rel (0) target = $region17
    $region16: #{forward.1} parent=1 // pred_region
      _
    $region17: #{forward.1} parent=1 // pred_fallthru
      _
    // Predicated region
    $region18: #{forward.1} parent=1 // pred_check
      _
    $region19: #{forward.1} parent=1 // pred_check_branch
      %32 = sbr.rel (0) target = $region21
    $region20: #{forward.1} parent=1 // pred_region
      _
    $region21: #{forward.1} parent=1 // pred_fallthru
      _
    // Predicated region
    $region22: #{forward.1} parent=1 // pred_check
      _
    $region23: #{forward.1} parent=1 // pred_check_branch
      %34 = sbr.rel (0) target = $region25
    $region24: #{forward.1} parent=1 // pred_region
      _
    $region25: #{forward.1} parent=1 // pred_fallthru
      _
    // Predicated region
    $region26: #{forward.1} parent=1 // pred_check
      _
    $region27: #{forward.1} parent=1 // pred_check_branch
      %36 = sbr.rel (0) target = $region29
    $region28: #{forward.1} parent=1 // pred_region
      _
    $region29: #{forward.1} parent=1 // pred_fallthru
      _
    // Predicated region
    $region30: #{forward.1} parent=1 // pred_check
      _
    $region31: #{forward.1} parent=1 // pred_check_branch
      %38 = sbr.rel (0) target = $region33
    $region32: #{forward.1} parent=1 // pred_region
      _
    $region33: #{forward.1} parent=1 // pred_fallthru
      _
    // Predicated region
    $region34: #{forward.1} parent=1 // pred_check
      _
    $region35: #{forward.1} parent=1 // pred_check_branch
      %40 = sbr.rel (0) target = $region37
    $region36: #{forward.1} parent=1 // pred_region
      _
    $region37: #{forward.1} parent=1 // pred_fallthru
      _
    // Predicated region
    $region38: #{forward.1} parent=1 // pred_check
      _
    $region39: #{forward.1} parent=1 // pred_check_branch
      %42 = sbr.rel (0) target = $region41
    $region40: #{forward.1} parent=1 // pred_region
      _
    $region41: #{forward.1} parent=1 // pred_fallthru
      _
    // Predicated region
    $region42: #{forward.1} parent=1 // pred_check
      _
    $region43: #{forward.1} parent=1 // pred_check_branch
      %44 = sbr.rel (0) target = $region45
    $region44: #{forward.1} parent=1 // pred_region
      _
    $region45: #{forward.1} parent=1 // pred_fallthru
      _
    // Predicated region
    $region46: #{forward.1} parent=1 // pred_check
      _
    $region47: #{forward.1} parent=1 // pred_check_branch
      %46 = sbr.rel (0) target = $region49
    $region48: #{forward.1} parent=1 // pred_region
      %s48 = ssub.s32 16, 16
      %49 = vsyncadd [#allocation6], %s48
      %s51 = sshll.u32 %s11, 4
      %s52 = int_to_ptr.vmem [resolvable:$true] %s51
      %54 = dma.vmem_to_smem %s52, 16, [#allocation4], [#allocation6]
    $region49: #{forward.1} parent=1 // pred_fallthru
      _
    // Predicated region
    $region50: #{forward.1} parent=1 // pred_check
      _
    $region51: #{forward.1} parent=1 // pred_check_branch
      %56 = sbr.rel (0) target = $region53
    $region52: #{forward.1} parent=1 // pred_region
      %57 = dma.done [#allocation6], 16
    $region53: #{forward.1} parent=1 // pred_fallthru
      _
    %58 = sfence
    %v60 = vld [vmem:[%s0] sm:$0xf]
    %v61 = vld [vmem:[%s0 + $0x4] sm:$0xf]
    %v62 = vld [vmem:[%s0 + $0x8] sm:$0xf]
    %v63 = vld [vmem:[%s0 + $0xc] sm:$0xf]
    %v64 = vld [vmem:[%s0 + $0x10] sm:$0xf]
    %v65 = vld [vmem:[%s0 + $0x14] sm:$0xf]
    %v66 = vld [vmem:[%s0 + $0x18] sm:$0xf]
    %v67 = vld [vmem:[%s0 + $0x1c] sm:$0xf]
    %v68 = vld [vmem:[%s1] sm:$0xf]
    %v69 = vld [vmem:[%s1 + $0x4] sm:$0xf]
    %v70 = vld [vmem:[%s1 + $0x8] sm:$0xf]
    %v71 = vld [vmem:[%s1 + $0xc] sm:$0xf]
    %v80 = vunpack.c.l.b16 %v60
    %v81 = vunpack.c.l.b16 %v61
    %v82 = vunpack.c.l.b16 %v62
    %v83 = vunpack.c.l.b16 %v63
    %v84 = vunpack.c.l.b16 %v64
    %v85 = vunpack.c.l.b16 %v65
    %v86 = vunpack.c.l.b16 %v66
    %v87 = vunpack.c.l.b16 %v67
    %v88 = vpack.c.b16 %v81, %v80
    %v89 = vpack.c.b16 %v83, %v82
    %v90 = vpack.c.b16 %v85, %v84
    %v91 = vpack.c.b16 %v87, %v86
    %v96 = vunpack.c.l.b16 %v68
    %v97 = vunpack.c.l.b16 %v69
    %v98 = vunpack.c.l.b16 %v70
    %v99 = vunpack.c.l.b16 %v71
    %v100 = vpack.c.b16 %v97, %v96
    %v101 = vpack.c.b16 %v99, %v98
    %vm104 = vcmask 261120
    %v106 = vsel %vm104, %v88, 0
    %v109 = vsel %vm104, %v89, 0
    %v112 = vsel %vm104, %v90, 0
    %v115 = vsel %vm104, %v91, 0
    %117 = vmatprep.subr.bf16.mxu0 0
    %118 = vmatpush1.bf16.msra.mxu0 %v100
    %119 = vmatprep.subr.bf16.mxu0 0
    %120 = vmatpush1.bf16.msra.mxu0 %v101
    %121 = vmatprep.subr.bf16.mxu0 0
    %122 = vmatpush1.bf16.msra.mxu0 0
    %123 = vmatprep.subr.bf16.mxu0 0
    %124 = vmatpush1.bf16.msra.mxu0 0
    %125 = vmatprep.subr.bf16.mxu0 0
    %126 = vmatpush1.bf16.msra.mxu0 0
    %127 = vmatprep.subr.bf16.mxu0 0
    %128 = vmatpush1.bf16.msra.mxu0 0
    %129 = vmatprep.subr.bf16.mxu0 0
    %130 = vmatpush1.bf16.msra.mxu0 0
    %131 = vmatprep.subr.bf16.mxu0 0
    %132 = vmatpush1.bf16.msra.mxu0 0
    %133 = vmatprep.subr.bf16.mxu0 0
    %134 = vmatpush1.bf16.msra.mxu0 0
    %135 = vmatprep.subr.bf16.mxu0 0
    %136 = vmatpush1.bf16.msra.mxu0 0
    %137 = vmatprep.subr.bf16.mxu0 0
    %138 = vmatpush1.bf16.msra.mxu0 0
    %139 = vmatprep.subr.bf16.mxu0 0
    %140 = vmatpush1.bf16.msra.mxu0 0
    %141 = vmatprep.subr.bf16.mxu0 0
    %142 = vmatpush1.bf16.msra.mxu0 0
    %143 = vmatprep.subr.bf16.mxu0 0
    %144 = vmatpush1.bf16.msra.mxu0 0
    %145 = vmatprep.subr.bf16.mxu0 0
    %146 = vmatpush1.bf16.msra.mxu0 0
    %147 = vmatprep.subr.bf16.mxu0 0
    %148 = vmatpush1.bf16.msra.mxu0 0
    %149 = vmatprep.mubr.bf16.mxu0 0
    %150 = vmatmul.mubr.bf16.gmra.mrb[0].mxu0 %v106
    %v151 = vpop.f32.mrb[0].mxu0
    %v152 = vadd.f32 0.0, %v151
    %v153 = vpop.f32.mrb[0].mxu0
    %v154 = vpop.f32.mrb[0].mxu0
    %v155 = vadd.f32 0.0, %v154
    %v156 = vpop.f32.mrb[0].mxu0
    %157 = vmatprep.mubr.bf16.mxu0 0
    %158 = vmatmul.mubr.bf16.gmra.mrb[0].mxu0 %v109
    %v159 = vpop.f32.mrb[0].mxu0
    %v160 = vadd.f32 0.0, %v159
    %v161 = vpop.f32.mrb[0].mxu0
    %v162 = vpop.f32.mrb[0].mxu0
    %v163 = vadd.f32 0.0, %v162
    %v164 = vpop.f32.mrb[0].mxu0
    %165 = vmatprep.mubr.bf16.mxu0 0
    %166 = vmatmul.mubr.bf16.gmra.mrb[0].mxu0 %v112
    %v167 = vpop.f32.mrb[0].mxu0
    %v168 = vadd.f32 0.0, %v167
    %v169 = vpop.f32.mrb[0].mxu0
    %v170 = vpop.f32.mrb[0].mxu0
    %v171 = vadd.f32 0.0, %v170
    %v172 = vpop.f32.mrb[0].mxu0
    %173 = vmatprep.mubr.bf16.mxu0 0
    %174 = vmatmul.mubr.bf16.gmra.mrb[0].mxu0 %v115
    %v175 = vpop.f32.mrb[0].mxu0
    %v176 = vadd.f32 0.0, %v175
    %v177 = vpop.f32.mrb[0].mxu0
    %v178 = vpop.f32.mrb[0].mxu0
    %v179 = vadd.f32 0.0, %v178
    %v180 = vpop.f32.mrb[0].mxu0
    %181 = vdwg.mxu0
    %v182 = vpack.c.bf16 %v155, %v152
    %v183 = vpack.c.bf16 %v163, %v160
    %v184 = vpack.c.bf16 %v171, %v168
    %v185 = vpack.c.bf16 %v179, %v176
    %186 = vst [vmem:[#allocation3] sm:$0xff] %v182
    %187 = vst [vmem:[#allocation3 + $0x8] sm:$0xff] %v183
    %188 = vst [vmem:[#allocation3 + $0x10] sm:$0xff] %v184
    %189 = vst [vmem:[#allocation3 + $0x18] sm:$0xff] %v185
    %v190 = vld [vmem:[%s2] sm:$0xf]
    %v191 = vld [vmem:[%s2 + $0x4] sm:$0xf]
    %v192 = vld [vmem:[%s2 + $0x8] sm:$0xf]
    %v193 = vld [vmem:[%s2 + $0xc] sm:$0xf]
    %v194 = vld [vmem:[%s3] sm:$0x1]
    %v195 = vld [vmem:[%s7] sm:$0xff]
    %v196 = vld [vmem:[%s8] sm:$0xff]
    %v197 = vld [vmem:[#allocation3] sm:$0xf]
    %v198 = vunpack.c.l.bf16 %v197
    %v200 = vlaneseq
    %v201 = vshrl.u32 %v200, 7
    %v202 = vsub.s32 0, %v201
    %v203 = vrot.slane %v194, %v202
    %v205 = vadd.f32 %v198, %v203
    %v206 = vpack.c.bf16 %v195, %v195
    %v211 = vunpack.c.l.b16 %v190
    %v212 = vunpack.c.l.b16 %v191
    %v213 = vunpack.c.l.b16 %v192
    %v214 = vunpack.c.l.b16 %v193
    %v215 = vpack.c.b16 %v212, %v211
    %v216 = vpack.c.b16 %v214, %v213
    %v220 = vsel %vm104, %v206, 0
    %222 = vmatprep.subr.bf16.mxu0 0
    %223 = vmatpush1.bf16.msra.mxu0 %v215
    %224 = vmatprep.subr.bf16.mxu0 0
    %225 = vmatpush1.bf16.msra.mxu0 %v216
    %226 = vmatprep.subr.bf16.mxu0 0
    %227 = vmatpush1.bf16.msra.mxu0 0
    %228 = vmatprep.subr.bf16.mxu0 0
    %229 = vmatpush1.bf16.msra.mxu0 0
    %230 = vmatprep.subr.bf16.mxu0 0
    %231 = vmatpush1.bf16.msra.mxu0 0
    %232 = vmatprep.subr.bf16.mxu0 0
    %233 = vmatpush1.bf16.msra.mxu0 0
    %234 = vmatprep.subr.bf16.mxu0 0
    %235 = vmatpush1.bf16.msra.mxu0 0
    %236 = vmatprep.subr.bf16.mxu0 0
    %237 = vmatpush1.bf16.msra.mxu0 0
    %238 = vmatprep.subr.bf16.mxu0 0
    %239 = vmatpush1.bf16.msra.mxu0 0
    %240 = vmatprep.subr.bf16.mxu0 0
    %241 = vmatpush1.bf16.msra.mxu0 0
    %242 = vmatprep.subr.bf16.mxu0 0
    %243 = vmatpush1.bf16.msra.mxu0 0
    %244 = vmatprep.subr.bf16.mxu0 0
    %245 = vmatpush1.bf16.msra.mxu0 0
    %246 = vmatprep.subr.bf16.mxu0 0
    %247 = vmatpush1.bf16.msra.mxu0 0
    %248 = vmatprep.subr.bf16.mxu0 0
    %249 = vmatpush1.bf16.msra.mxu0 0
    %250 = vmatprep.subr.bf16.mxu0 0
    %251 = vmatpush1.bf16.msra.mxu0 0
    %252 = vmatprep.subr.bf16.mxu0 0
    %253 = vmatpush1.bf16.msra.mxu0 0
    %254 = vmatprep.mubr.bf16.mxu0 0
    %255 = vmatmul.mubr.bf16.gmra.mrb[0].mxu0 %v220
    %v256 = vpop.f32.mrb[0].mxu0
    %v257 = vadd.f32 0.0, %v256
    %v258 = vpop.f32.mrb[0].mxu0
    %v259 = vpop.f32.mrb[0].mxu0
    %v260 = vpop.f32.mrb[0].mxu0
    %261 = vdwg.mxu0
    %v262 = vadd.f32 %v205, %v257
    %v263 = vxor.u32 %v262, 2147483648
    %v264 = vmul.f32 %v263, 1.442695
    %v265 = vpow.pop %v264
    %v266 = vadd.f32 %v265, 1.0
    %v267 = vrcp.pop %v266
    %v268 = vmul.f32 1.0, %v267
    %v269 = vtanh.pop %v262
    %271 = vrot.lane.b32.xlu0 %v196, 32
    %v272 = vpop.permute.xlu0 %271
    %v274 = vmul.f32 %v268, %v272
    %276 = vrot.lane.b32.xlu0 %v269, 64
    %v277 = vpop.permute.xlu0 %276
    %v279 = vmul.f32 %v268, %v277
    %281 = vrot.lane.b32.xlu0 %v279, 32
    %v282 = vpop.permute.xlu0 %281
    %v284 = vadd.f32 %v274, %v282
    %v285 = vtanh.pop %v284
    %287 = vrot.lane.b32.xlu0 %v285, 64
    %v288 = vpop.permute.xlu0 %287
    %v290 = vmul.f32 %v268, %v288
    %v291 = vpack.c.bf16 %v290, %v290
    %293 = vrot.lane.b32.xlu0 %v291, 32
    %v294 = vpop.permute.xlu0 %293
    %vm296 = vcmask 257024
    %297 = vst.msk [vmem:[#allocation2] sm:$0xf] %vm296, %v294
    %v298 = vld [vmem:[#allocation3] sm:$0xf0]
    %v300 = vrot.slane %v298, 4
    %v302 = vunpack.c.l.bf16 %v300
    %v303 = vadd.f32 %v302, %v203
    %v305 = vsel %vm104, %v294, 0
    %307 = vmatprep.subr.bf16.mxu0 0
    %308 = vmatpush1.bf16.msra.mxu0 %v215
    %309 = vmatprep.subr.bf16.mxu0 0
    %310 = vmatpush1.bf16.msra.mxu0 %v216
    %311 = vmatprep.subr.bf16.mxu0 0
    %312 = vmatpush1.bf16.msra.mxu0 0
    %313 = vmatprep.subr.bf16.mxu0 0
    %314 = vmatpush1.bf16.msra.mxu0 0
    %315 = vmatprep.subr.bf16.mxu0 0
    %316 = vmatpush1.bf16.msra.mxu0 0
    %317 = vmatprep.subr.bf16.mxu0 0
    %318 = vmatpush1.bf16.msra.mxu0 0
    %319 = vmatprep.subr.bf16.mxu0 0
    %320 = vmatpush1.bf16.msra.mxu0 0
    %321 = vmatprep.subr.bf16.mxu0 0
    %322 = vmatpush1.bf16.msra.mxu0 0
    %323 = vmatprep.subr.bf16.mxu0 0
    %324 = vmatpush1.bf16.msra.mxu0 0
    %325 = vmatprep.subr.bf16.mxu0 0
    %326 = vmatpush1.bf16.msra.mxu0 0
    %327 = vmatprep.subr.bf16.mxu0 0
    %328 = vmatpush1.bf16.msra.mxu0 0
    %329 = vmatprep.subr.bf16.mxu0 0
    %330 = vmatpush1.bf16.msra.mxu0 0
    %331 = vmatprep.subr.bf16.mxu0 0
    %332 = vmatpush1.bf16.msra.mxu0 0
    %333 = vmatprep.subr.bf16.mxu0 0
    %334 = vmatpush1.bf16.msra.mxu0 0
    %335 = vmatprep.subr.bf16.mxu0 0
    %336 = vmatpush1.bf16.msra.mxu0 0
    %337 = vmatprep.subr.bf16.mxu0 0
    %338 = vmatpush1.bf16.msra.mxu0 0
    %339 = vmatprep.mubr.bf16.mxu0 0
    %340 = vmatmul.mubr.bf16.gmra.mrb[0].mxu0 %v305
    %v341 = vpop.f32.mrb[0].mxu0
    %v342 = vadd.f32 0.0, %v341
    %v343 = vpop.f32.mrb[0].mxu0
    %v344 = vpop.f32.mrb[0].mxu0
    %v345 = vpop.f32.mrb[0].mxu0
    %346 = vdwg.mxu0
    %v347 = vadd.f32 %v303, %v342
    %v348 = vxor.u32 %v347, 2147483648
    %v349 = vmul.f32 %v348, 1.442695
    %v350 = vpow.pop %v349
    %v351 = vadd.f32 %v350, 1.0
    %v352 = vrcp.pop %v351
    %v353 = vmul.f32 1.0, %v352
    %v354 = vtanh.pop %v347
    %v355 = vmul.f32 %v353, %v284
    %357 = vrot.lane.b32.xlu0 %v354, 64
    %v358 = vpop.permute.xlu0 %357
    %v360 = vmul.f32 %v353, %v358
    %362 = vrot.lane.b32.xlu0 %v360, 32
    %v363 = vpop.permute.xlu0 %362
    %v365 = vadd.f32 %v355, %v363
    %v366 = vtanh.pop %v365
    %368 = vrot.lane.b32.xlu0 %v366, 64
    %v369 = vpop.permute.xlu0 %368
    %v371 = vmul.f32 %v353, %v369
    %v372 = vpack.c.bf16 %v371, %v371
    %v374 = vrot.slane %v372, 4
    %375 = vrot.lane.b32.xlu0 %v374, 32
    %v376 = vpop.permute.xlu0 %375
    %vm378 = vcmask 261124
    %379 = vst.msk [vmem:[#allocation2] sm:$0xf0] %vm378, %v376
    %v380 = vld [vmem:[#allocation3 + $0x8] sm:$0xf]
    %v381 = vunpack.c.l.bf16 %v380
    %v382 = vadd.f32 %v381, %v203
    %383 = vrot.lane.b32.xlu0 %v372, 32
    %v384 = vpop.permute.xlu0 %383
    %v386 = vsel %vm104, %v384, 0
    %388 = vmatprep.subr.bf16.mxu0 0
    %389 = vmatpush1.bf16.msra.mxu0 %v215
    %390 = vmatprep.subr.bf16.mxu0 0
    %391 = vmatpush1.bf16.msra.mxu0 %v216
    %392 = vmatprep.subr.bf16.mxu0 0
    %393 = vmatpush1.bf16.msra.mxu0 0
    %394 = vmatprep.subr.bf16.mxu0 0
    %395 = vmatpush1.bf16.msra.mxu0 0
    %396 = vmatprep.subr.bf16.mxu0 0
    %397 = vmatpush1.bf16.msra.mxu0 0
    %398 = vmatprep.subr.bf16.mxu0 0
    %399 = vmatpush1.bf16.msra.mxu0 0
    %400 = vmatprep.subr.bf16.mxu0 0
    %401 = vmatpush1.bf16.msra.mxu0 0
    %402 = vmatprep.subr.bf16.mxu0 0
    %403 = vmatpush1.bf16.msra.mxu0 0
    %404 = vmatprep.subr.bf16.mxu0 0
    %405 = vmatpush1.bf16.msra.mxu0 0
    %406 = vmatprep.subr.bf16.mxu0 0
    %407 = vmatpush1.bf16.msra.mxu0 0
    %408 = vmatprep.subr.bf16.mxu0 0
    %409 = vmatpush1.bf16.msra.mxu0 0
    %410 = vmatprep.subr.bf16.mxu0 0
    %411 = vmatpush1.bf16.msra.mxu0 0
    %412 = vmatprep.subr.bf16.mxu0 0
    %413 = vmatpush1.bf16.msra.mxu0 0
    %414 = vmatprep.subr.bf16.mxu0 0
    %415 = vmatpush1.bf16.msra.mxu0 0
    %416 = vmatprep.subr.bf16.mxu0 0
    %417 = vmatpush1.bf16.msra.mxu0 0
    %418 = vmatprep.subr.bf16.mxu0 0
    %419 = vmatpush1.bf16.msra.mxu0 0
    %420 = vmatprep.mubr.bf16.mxu0 0
    %421 = vmatmul.mubr.bf16.gmra.mrb[0].mxu0 %v386
    %v422 = vpop.f32.mrb[0].mxu0
    %v423 = vadd.f32 0.0, %v422
    %v424 = vpop.f32.mrb[0].mxu0
    %v425 = vpop.f32.mrb[0].mxu0
    %v426 = vpop.f32.mrb[0].mxu0
    %427 = vdwg.mxu0
    %v428 = vadd.f32 %v382, %v423
    %v429 = vxor.u32 %v428, 2147483648
    %v430 = vmul.f32 %v429, 1.442695
    %v431 = vpow.pop %v430
    %v432 = vadd.f32 %v431, 1.0
    %v433 = vrcp.pop %v432
    %v434 = vmul.f32 1.0, %v433
    %v435 = vtanh.pop %v428
    %v436 = vmul.f32 %v434, %v365
    %438 = vrot.lane.b32.xlu0 %v435, 64
    %v439 = vpop.permute.xlu0 %438
    %v441 = vmul.f32 %v434, %v439
    %443 = vrot.lane.b32.xlu0 %v441, 32
    %v444 = vpop.permute.xlu0 %443
    %v446 = vadd.f32 %v436, %v444
    %v447 = vtanh.pop %v446
    %449 = vrot.lane.b32.xlu0 %v447, 64
    %v450 = vpop.permute.xlu0 %449
    %v452 = vmul.f32 %v434, %v450
    %v453 = vpack.c.bf16 %v452, %v452
    %455 = vrot.lane.b32.xlu0 %v453, 32
    %v456 = vpop.permute.xlu0 %455
    %458 = vst.msk [vmem:[#allocation2 + $0x8] sm:$0xf] %vm296, %v456
    %v459 = vld [vmem:[#allocation3 + $0x8] sm:$0xf0]
    %v461 = vrot.slane %v459, 4
    %v463 = vunpack.c.l.bf16 %v461
    %v464 = vadd.f32 %v463, %v203
    %v466 = vsel %vm104, %v456, 0
    %468 = vmatprep.subr.bf16.mxu0 0
    %469 = vmatpush1.bf16.msra.mxu0 %v215
    %470 = vmatprep.subr.bf16.mxu0 0
    %471 = vmatpush1.bf16.msra.mxu0 %v216
    %472 = vmatprep.subr.bf16.mxu0 0
    %473 = vmatpush1.bf16.msra.mxu0 0
    %474 = vmatprep.subr.bf16.mxu0 0
    %475 = vmatpush1.bf16.msra.mxu0 0
    %476 = vmatprep.subr.bf16.mxu0 0
    %477 = vmatpush1.bf16.msra.mxu0 0
    %478 = vmatprep.subr.bf16.mxu0 0
    %479 = vmatpush1.bf16.msra.mxu0 0
    %480 = vmatprep.subr.bf16.mxu0 0
    %481 = vmatpush1.bf16.msra.mxu0 0
    %482 = vmatprep.subr.bf16.mxu0 0
    %483 = vmatpush1.bf16.msra.mxu0 0
    %484 = vmatprep.subr.bf16.mxu0 0
    %485 = vmatpush1.bf16.msra.mxu0 0
    %486 = vmatprep.subr.bf16.mxu0 0
    %487 = vmatpush1.bf16.msra.mxu0 0
    %488 = vmatprep.subr.bf16.mxu0 0
    %489 = vmatpush1.bf16.msra.mxu0 0
    %490 = vmatprep.subr.bf16.mxu0 0
    %491 = vmatpush1.bf16.msra.mxu0 0
    %492 = vmatprep.subr.bf16.mxu0 0
    %493 = vmatpush1.bf16.msra.mxu0 0
    %494 = vmatprep.subr.bf16.mxu0 0
    %495 = vmatpush1.bf16.msra.mxu0 0
    %496 = vmatprep.subr.bf16.mxu0 0
    %497 = vmatpush1.bf16.msra.mxu0 0
    %498 = vmatprep.subr.bf16.mxu0 0
    %499 = vmatpush1.bf16.msra.mxu0 0
    %500 = vmatprep.mubr.bf16.mxu0 0
    %501 = vmatmul.mubr.bf16.gmra.mrb[0].mxu0 %v466
    %v502 = vpop.f32.mrb[0].mxu0
    %v503 = vadd.f32 0.0, %v502
    %v504 = vpop.f32.mrb[0].mxu0
    %v505 = vpop.f32.mrb[0].mxu0
    %v506 = vpop.f32.mrb[0].mxu0
    %507 = vdwg.mxu0
    %v508 = vadd.f32 %v464, %v503
    %v509 = vxor.u32 %v508, 2147483648
    %v510 = vmul.f32 %v509, 1.442695
    %v511 = vpow.pop %v510
    %v512 = vadd.f32 %v511, 1.0
    %v513 = vrcp.pop %v512
    %v514 = vmul.f32 1.0, %v513
    %v515 = vtanh.pop %v508
    %v516 = vmul.f32 %v514, %v446
    %518 = vrot.lane.b32.xlu0 %v515, 64
    %v519 = vpop.permute.xlu0 %518
    %v521 = vmul.f32 %v514, %v519
    %523 = vrot.lane.b32.xlu0 %v521, 32
    %v524 = vpop.permute.xlu0 %523
    %v526 = vadd.f32 %v516, %v524
    %v527 = vtanh.pop %v526
    %529 = vrot.lane.b32.xlu0 %v527, 64
    %v530 = vpop.permute.xlu0 %529
    %v532 = vmul.f32 %v514, %v530
    %v533 = vpack.c.bf16 %v532, %v532
    %v535 = vrot.slane %v533, 4
    %536 = vrot.lane.b32.xlu0 %v535, 32
    %v537 = vpop.permute.xlu0 %536
    %539 = vst.msk [vmem:[#allocation2 + $0x8] sm:$0xf0] %vm378, %v537
    %v540 = vld [vmem:[#allocation3 + $0x10] sm:$0xf]
    %v541 = vunpack.c.l.bf16 %v540
    %v542 = vadd.f32 %v541, %v203
    %543 = vrot.lane.b32.xlu0 %v533, 32
    %v544 = vpop.permute.xlu0 %543
    %v546 = vsel %vm104, %v544, 0
    %548 = vmatprep.subr.bf16.mxu0 0
    %549 = vmatpush1.bf16.msra.mxu0 %v215
    %550 = vmatprep.subr.bf16.mxu0 0
    %551 = vmatpush1.bf16.msra.mxu0 %v216
    %552 = vmatprep.subr.bf16.mxu0 0
    %553 = vmatpush1.bf16.msra.mxu0 0
    %554 = vmatprep.subr.bf16.mxu0 0
    %555 = vmatpush1.bf16.msra.mxu0 0
    %556 = vmatprep.subr.bf16.mxu0 0
    %557 = vmatpush1.bf16.msra.mxu0 0
    %558 = vmatprep.subr.bf16.mxu0 0
    %559 = vmatpush1.bf16.msra.mxu0 0
    %560 = vmatprep.subr.bf16.mxu0 0
    %561 = vmatpush1.bf16.msra.mxu0 0
    %562 = vmatprep.subr.bf16.mxu0 0
    %563 = vmatpush1.bf16.msra.mxu0 0
    %564 = vmatprep.subr.bf16.mxu0 0
    %565 = vmatpush1.bf16.msra.mxu0 0
    %566 = vmatprep.subr.bf16.mxu0 0
    %567 = vmatpush1.bf16.msra.mxu0 0
    %568 = vmatprep.subr.bf16.mxu0 0
    %569 = vmatpush1.bf16.msra.mxu0 0
    %570 = vmatprep.subr.bf16.mxu0 0
    %571 = vmatpush1.bf16.msra.mxu0 0
    %572 = vmatprep.subr.bf16.mxu0 0
    %573 = vmatpush1.bf16.msra.mxu0 0
    %574 = vmatprep.subr.bf16.mxu0 0
    %575 = vmatpush1.bf16.msra.mxu0 0
    %576 = vmatprep.subr.bf16.mxu0 0
    %577 = vmatpush1.bf16.msra.mxu0 0
    %578 = vmatprep.subr.bf16.mxu0 0
    %579 = vmatpush1.bf16.msra.mxu0 0
    %580 = vmatprep.mubr.bf16.mxu0 0
    %581 = vmatmul.mubr.bf16.gmra.mrb[0].mxu0 %v546
    %v582 = vpop.f32.mrb[0].mxu0
    %v583 = vadd.f32 0.0, %v582
    %v584 = vpop.f32.mrb[0].mxu0
    %v585 = vpop.f32.mrb[0].mxu0
    %v586 = vpop.f32.mrb[0].mxu0
    %587 = vdwg.mxu0
    %v588 = vadd.f32 %v542, %v583
    %v589 = vxor.u32 %v588, 2147483648
    %v590 = vmul.f32 %v589, 1.442695
    %v591 = vpow.pop %v590
    %v592 = vadd.f32 %v591, 1.0
    %v593 = vrcp.pop %v592
    %v594 = vmul.f32 1.0, %v593
    %v595 = vtanh.pop %v588
    %v596 = vmul.f32 %v594, %v526
    %598 = vrot.lane.b32.xlu0 %v595, 64
    %v599 = vpop.permute.xlu0 %598
    %v601 = vmul.f32 %v594, %v599
    %603 = vrot.lane.b32.xlu0 %v601, 32
    %v604 = vpop.permute.xlu0 %603
    %v606 = vadd.f32 %v596, %v604
    %v607 = vtanh.pop %v606
    %609 = vrot.lane.b32.xlu0 %v607, 64
    %v610 = vpop.permute.xlu0 %609
    %v612 = vmul.f32 %v594, %v610
    %v613 = vpack.c.bf16 %v612, %v612
    %615 = vrot.lane.b32.xlu0 %v613, 32
    %v616 = vpop.permute.xlu0 %615
    %618 = vst.msk [vmem:[#allocation2 + $0x10] sm:$0xf] %vm296, %v616
    %v619 = vld [vmem:[#allocation3 + $0x10] sm:$0xf0]
    %v621 = vrot.slane %v619, 4
    %v623 = vunpack.c.l.bf16 %v621
    %v624 = vadd.f32 %v623, %v203
    %v626 = vsel %vm104, %v616, 0
    %628 = vmatprep.subr.bf16.mxu0 0
    %629 = vmatpush1.bf16.msra.mxu0 %v215
    %630 = vmatprep.subr.bf16.mxu0 0
    %631 = vmatpush1.bf16.msra.mxu0 %v216
    %632 = vmatprep.subr.bf16.mxu0 0
    %633 = vmatpush1.bf16.msra.mxu0 0
    %634 = vmatprep.subr.bf16.mxu0 0
    %635 = vmatpush1.bf16.msra.mxu0 0
    %636 = vmatprep.subr.bf16.mxu0 0
    %637 = vmatpush1.bf16.msra.mxu0 0
    %638 = vmatprep.subr.bf16.mxu0 0
    %639 = vmatpush1.bf16.msra.mxu0 0
    %640 = vmatprep.subr.bf16.mxu0 0
    %641 = vmatpush1.bf16.msra.mxu0 0
    %642 = vmatprep.subr.bf16.mxu0 0
    %643 = vmatpush1.bf16.msra.mxu0 0
    %644 = vmatprep.subr.bf16.mxu0 0
    %645 = vmatpush1.bf16.msra.mxu0 0
    %646 = vmatprep.subr.bf16.mxu0 0
    %647 = vmatpush1.bf16.msra.mxu0 0
    %648 = vmatprep.subr.bf16.mxu0 0
    %649 = vmatpush1.bf16.msra.mxu0 0
    %650 = vmatprep.subr.bf16.mxu0 0
    %651 = vmatpush1.bf16.msra.mxu0 0
    %652 = vmatprep.subr.bf16.mxu0 0
    %653 = vmatpush1.bf16.msra.mxu0 0
    %654 = vmatprep.subr.bf16.mxu0 0
    %655 = vmatpush1.bf16.msra.mxu0 0
    %656 = vmatprep.subr.bf16.mxu0 0
    %657 = vmatpush1.bf16.msra.mxu0 0
    %658 = vmatprep.subr.bf16.mxu0 0
    %659 = vmatpush1.bf16.msra.mxu0 0
    %660 = vmatprep.mubr.bf16.mxu0 0
    %661 = vmatmul.mubr.bf16.gmra.mrb[0].mxu0 %v626
    %v662 = vpop.f32.mrb[0].mxu0
    %v663 = vadd.f32 0.0, %v662
    %v664 = vpop.f32.mrb[0].mxu0
    %v665 = vpop.f32.mrb[0].mxu0
    %v666 = vpop.f32.mrb[0].mxu0
    %667 = vdwg.mxu0
    %v668 = vadd.f32 %v624, %v663
    %v669 = vxor.u32 %v668, 2147483648
    %v670 = vmul.f32 %v669, 1.442695
    %v671 = vpow.pop %v670
    %v672 = vadd.f32 %v671, 1.0
    %v673 = vrcp.pop %v672
    %v674 = vmul.f32 1.0, %v673
    %v675 = vtanh.pop %v668
    %v676 = vmul.f32 %v674, %v606
    %678 = vrot.lane.b32.xlu0 %v675, 64
    %v679 = vpop.permute.xlu0 %678
    %v681 = vmul.f32 %v674, %v679
    %683 = vrot.lane.b32.xlu0 %v681, 32
    %v684 = vpop.permute.xlu0 %683
    %v686 = vadd.f32 %v676, %v684
    %v687 = vtanh.pop %v686
    %689 = vrot.lane.b32.xlu0 %v687, 64
    %v690 = vpop.permute.xlu0 %689
    %v692 = vmul.f32 %v674, %v690
    %v693 = vpack.c.bf16 %v692, %v692
    %v695 = vrot.slane %v693, 4
    %696 = vrot.lane.b32.xlu0 %v695, 32
    %v697 = vpop.permute.xlu0 %696
    %699 = vst.msk [vmem:[#allocation2 + $0x10] sm:$0xf0] %vm378, %v697
    %v700 = vld [vmem:[#allocation3 + $0x18] sm:$0xf]
    %v701 = vunpack.c.l.bf16 %v700
    %v702 = vadd.f32 %v701, %v203
    %703 = vrot.lane.b32.xlu0 %v693, 32
    %v704 = vpop.permute.xlu0 %703
    %v706 = vsel %vm104, %v704, 0
    %708 = vmatprep.subr.bf16.mxu0 0
    %709 = vmatpush1.bf16.msra.mxu0 %v215
    %710 = vmatprep.subr.bf16.mxu0 0
    %711 = vmatpush1.bf16.msra.mxu0 %v216
    %712 = vmatprep.subr.bf16.mxu0 0
    %713 = vmatpush1.bf16.msra.mxu0 0
    %714 = vmatprep.subr.bf16.mxu0 0
    %715 = vmatpush1.bf16.msra.mxu0 0
    %716 = vmatprep.subr.bf16.mxu0 0
    %717 = vmatpush1.bf16.msra.mxu0 0
    %718 = vmatprep.subr.bf16.mxu0 0
    %719 = vmatpush1.bf16.msra.mxu0 0
    %720 = vmatprep.subr.bf16.mxu0 0
    %721 = vmatpush1.bf16.msra.mxu0 0
    %722 = vmatprep.subr.bf16.mxu0 0
    %723 = vmatpush1.bf16.msra.mxu0 0
    %724 = vmatprep.subr.bf16.mxu0 0
    %725 = vmatpush1.bf16.msra.mxu0 0
    %726 = vmatprep.subr.bf16.mxu0 0
    %727 = vmatpush1.bf16.msra.mxu0 0
    %728 = vmatprep.subr.bf16.mxu0 0
    %729 = vmatpush1.bf16.msra.mxu0 0
    %730 = vmatprep.subr.bf16.mxu0 0
    %731 = vmatpush1.bf16.msra.mxu0 0
    %732 = vmatprep.subr.bf16.mxu0 0
    %733 = vmatpush1.bf16.msra.mxu0 0
    %734 = vmatprep.subr.bf16.mxu0 0
    %735 = vmatpush1.bf16.msra.mxu0 0
    %736 = vmatprep.subr.bf16.mxu0 0
    %737 = vmatpush1.bf16.msra.mxu0 0
    %738 = vmatprep.subr.bf16.mxu0 0
    %739 = vmatpush1.bf16.msra.mxu0 0
    %740 = vmatprep.mubr.bf16.mxu0 0
    %741 = vmatmul.mubr.bf16.gmra.mrb[0].mxu0 %v706
    %v742 = vpop.f32.mrb[0].mxu0
    %v743 = vadd.f32 0.0, %v742
    %v744 = vpop.f32.mrb[0].mxu0
    %v745 = vpop.f32.mrb[0].mxu0
    %v746 = vpop.f32.mrb[0].mxu0
    %747 = vdwg.mxu0
    %v748 = vadd.f32 %v702, %v743
    %v749 = vxor.u32 %v748, 2147483648
    %v750 = vmul.f32 %v749, 1.442695
    %v751 = vpow.pop %v750
    %v752 = vadd.f32 %v751, 1.0
    %v753 = vrcp.pop %v752
    %v754 = vmul.f32 1.0, %v753
    %v755 = vtanh.pop %v748
    %v756 = vmul.f32 %v754, %v686
    %758 = vrot.lane.b32.xlu0 %v755, 64
    %v759 = vpop.permute.xlu0 %758
    %v761 = vmul.f32 %v754, %v759
    %763 = vrot.lane.b32.xlu0 %v761, 32
    %v764 = vpop.permute.xlu0 %763
    %v766 = vadd.f32 %v756, %v764
    %v767 = vtanh.pop %v766
    %769 = vrot.lane.b32.xlu0 %v767, 64
    %v770 = vpop.permute.xlu0 %769
    %v772 = vmul.f32 %v754, %v770
    %v773 = vpack.c.bf16 %v772, %v772
    %775 = vrot.lane.b32.xlu0 %v773, 32
    %v776 = vpop.permute.xlu0 %775
    %778 = vst.msk [vmem:[#allocation2 + $0x18] sm:$0xf] %vm296, %v776
    %v779 = vld [vmem:[#allocation3 + $0x18] sm:$0xf0]
    %v781 = vrot.slane %v779, 4
    %v783 = vunpack.c.l.bf16 %v781
    %v784 = vadd.f32 %v783, %v203
    %v786 = vsel %vm104, %v776, 0
    %788 = vmatprep.subr.bf16.mxu0 0
    %789 = vmatpush1.bf16.msra.mxu0 %v215
    %790 = vmatprep.subr.bf16.mxu0 0
    %791 = vmatpush1.bf16.msra.mxu0 %v216
    %792 = vmatprep.subr.bf16.mxu0 0
    %793 = vmatpush1.bf16.msra.mxu0 0
    %794 = vmatprep.subr.bf16.mxu0 0
    %795 = vmatpush1.bf16.msra.mxu0 0
    %796 = vmatprep.subr.bf16.mxu0 0
    %797 = vmatpush1.bf16.msra.mxu0 0
    %798 = vmatprep.subr.bf16.mxu0 0
    %799 = vmatpush1.bf16.msra.mxu0 0
    %800 = vmatprep.subr.bf16.mxu0 0
    %801 = vmatpush1.bf16.msra.mxu0 0
    %802 = vmatprep.subr.bf16.mxu0 0
    %803 = vmatpush1.bf16.msra.mxu0 0
    %804 = vmatprep.subr.bf16.mxu0 0
    %805 = vmatpush1.bf16.msra.mxu0 0
    %806 = vmatprep.subr.bf16.mxu0 0
    %807 = vmatpush1.bf16.msra.mxu0 0
    %808 = vmatprep.subr.bf16.mxu0 0
    %809 = vmatpush1.bf16.msra.mxu0 0
    %810 = vmatprep.subr.bf16.mxu0 0
    %811 = vmatpush1.bf16.msra.mxu0 0
    %812 = vmatprep.subr.bf16.mxu0 0
    %813 = vmatpush1.bf16.msra.mxu0 0
    %814 = vmatprep.subr.bf16.mxu0 0
    %815 = vmatpush1.bf16.msra.mxu0 0
    %816 = vmatprep.subr.bf16.mxu0 0
    %817 = vmatpush1.bf16.msra.mxu0 0
    %818 = vmatprep.subr.bf16.mxu0 0
    %819 = vmatpush1.bf16.msra.mxu0 0
    %820 = vmatprep.mubr.bf16.mxu0 0
    %821 = vmatmul.mubr.bf16.gmra.mrb[0].mxu0 %v786
    %v822 = vpop.f32.mrb[0].mxu0
    %v823 = vadd.f32 0.0, %v822
    %v824 = vpop.f32.mrb[0].mxu0
    %v825 = vpop.f32.mrb[0].mxu0
    %v826 = vpop.f32.mrb[0].mxu0
    %827 = vdwg.mxu0
    %v828 = vadd.f32 %v784, %v823
    %v829 = vxor.u32 %v828, 2147483648
    %v830 = vmul.f32 %v829, 1.442695
    %v831 = vpow.pop %v830
    %v832 = vadd.f32 %v831, 1.0
    %v833 = vrcp.pop %v832
    %v834 = vmul.f32 1.0, %v833
    %v835 = vtanh.pop %v828
    %v836 = vmul.f32 %v834, %v766
    %838 = vrot.lane.b32.xlu0 %v835, 64
    %v839 = vpop.permute.xlu0 %838
    %v841 = vmul.f32 %v834, %v839
    %843 = vrot.lane.b32.xlu0 %v841, 32
    %v844 = vpop.permute.xlu0 %843
    %v846 = vadd.f32 %v836, %v844
    %v847 = vtanh.pop %v846
    %849 = vrot.lane.b32.xlu0 %v847, 64
    %v850 = vpop.permute.xlu0 %849
    %v852 = vmul.f32 %v834, %v850
    %v853 = vpack.c.bf16 %v852, %v852
    %v855 = vrot.slane %v853, 4
    %856 = vrot.lane.b32.xlu0 %v855, 32
    %v857 = vpop.permute.xlu0 %856
    %859 = vst.msk [vmem:[#allocation2 + $0x18] sm:$0xf0] %vm378, %v857
    %861 = vrot.lane.b32.xlu0 %v852, 32
    %v862 = vpop.permute.xlu0 %861
    %864 = vst.msk [vmem:[%s14] sm:$0xff] %vm104, %v862
    %866 = vrot.lane.b32.xlu0 %v846, 96
    %v867 = vpop.permute.xlu0 %866
    %869 = vst.msk [vmem:[%s15] sm:$0xff] %vm104, %v867
    %v870 = vld [vmem:[#allocation2] sm:$0xff]
    %v871 = vld [vmem:[#allocation2 + $0x8] sm:$0xff]
    %v872 = vld [vmem:[#allocation2 + $0x10] sm:$0xff]
    %v873 = vld [vmem:[#allocation2 + $0x18] sm:$0xff]
    %v874 = vld [vmem:[%s4] sm:$0xf]
    %v875 = vld [vmem:[%s4 + $0x4] sm:$0xf]
    %v876 = vld [vmem:[%s4 + $0x8] sm:$0xf]
    %v877 = vld [vmem:[%s4 + $0xc] sm:$0xf]
    %v882 = vunpack.c.l.b16 %v874
    %v883 = vunpack.c.l.b16 %v875
    %v884 = vunpack.c.l.b16 %v876
    %v885 = vunpack.c.l.b16 %v877
    %v886 = vpack.c.b16 %v883, %v882
    %v887 = vpack.c.b16 %v885, %v884
    %v891 = vsel %vm104, %v870, 0
    %v894 = vsel %vm104, %v871, 0
    %v897 = vsel %vm104, %v872, 0
    %v900 = vsel %vm104, %v873, 0
    %902 = vmatprep.subr.bf16.mxu0 0
    %903 = vmatpush1.bf16.msra.mxu0 %v886
    %904 = vmatprep.subr.bf16.mxu0 0
    %905 = vmatpush1.bf16.msra.mxu0 %v887
    %906 = vmatprep.subr.bf16.mxu0 0
    %907 = vmatpush1.bf16.msra.mxu0 0
    %908 = vmatprep.subr.bf16.mxu0 0
    %909 = vmatpush1.bf16.msra.mxu0 0
    %910 = vmatprep.subr.bf16.mxu0 0
    %911 = vmatpush1.bf16.msra.mxu0 0
    %912 = vmatprep.subr.bf16.mxu0 0
    %913 = vmatpush1.bf16.msra.mxu0 0
    %914 = vmatprep.subr.bf16.mxu0 0
    %915 = vmatpush1.bf16.msra.mxu0 0
    %916 = vmatprep.subr.bf16.mxu0 0
    %917 = vmatpush1.bf16.msra.mxu0 0
    %918 = vmatprep.subr.bf16.mxu0 0
    %919 = vmatpush1.bf16.msra.mxu0 0
    %920 = vmatprep.subr.bf16.mxu0 0
    %921 = vmatpush1.bf16.msra.mxu0 0
    %922 = vmatprep.subr.bf16.mxu0 0
    %923 = vmatpush1.bf16.msra.mxu0 0
    %924 = vmatprep.subr.bf16.mxu0 0
    %925 = vmatpush1.bf16.msra.mxu0 0
    %926 = vmatprep.subr.bf16.mxu0 0
    %927 = vmatpush1.bf16.msra.mxu0 0
    %928 = vmatprep.subr.bf16.mxu0 0
    %929 = vmatpush1.bf16.msra.mxu0 0
    %930 = vmatprep.subr.bf16.mxu0 0
    %931 = vmatpush1.bf16.msra.mxu0 0
    %932 = vmatprep.subr.bf16.mxu0 0
    %933 = vmatpush1.bf16.msra.mxu0 0
    %934 = vmatprep.mubr.bf16.mxu0 0
    %935 = vmatmul.mubr.bf16.gmra.mrb[0].mxu0 %v891
    %v936 = vpop.f32.mrb[0].mxu0
    %v937 = vadd.f32 0.0, %v936
    %v938 = vpop.f32.mrb[0].mxu0
    %v939 = vpop.f32.mrb[0].mxu0
    %v940 = vadd.f32 0.0, %v939
    %v941 = vpop.f32.mrb[0].mxu0
    %942 = vmatprep.mubr.bf16.mxu0 0
    %943 = vmatmul.mubr.bf16.gmra.mrb[0].mxu0 %v894
    %v944 = vpop.f32.mrb[0].mxu0
    %v945 = vadd.f32 0.0, %v944
    %v946 = vpop.f32.mrb[0].mxu0
    %v947 = vpop.f32.mrb[0].mxu0
    %v948 = vadd.f32 0.0, %v947
    %v949 = vpop.f32.mrb[0].mxu0
    %950 = vmatprep.mubr.bf16.mxu0 0
    %951 = vmatmul.mubr.bf16.gmra.mrb[0].mxu0 %v897
    %v952 = vpop.f32.mrb[0].mxu0
    %v953 = vadd.f32 0.0, %v952
    %v954 = vpop.f32.mrb[0].mxu0
    %v955 = vpop.f32.mrb[0].mxu0
    %v956 = vadd.f32 0.0, %v955
    %v957 = vpop.f32.mrb[0].mxu0
    %958 = vmatprep.mubr.bf16.mxu0 0
    %959 = vmatmul.mubr.bf16.gmra.mrb[0].mxu0 %v900
    %v960 = vpop.f32.mrb[0].mxu0
    %v961 = vadd.f32 0.0, %v960
    %v962 = vpop.f32.mrb[0].mxu0
    %v963 = vpop.f32.mrb[0].mxu0
    %v964 = vadd.f32 0.0, %v963
    %v965 = vpop.f32.mrb[0].mxu0
    %966 = vdwg.mxu0
    %v967 = vpack.c.bf16 %v940, %v937
    %v968 = vpack.c.bf16 %v948, %v945
    %v969 = vpack.c.bf16 %v956, %v953
    %v970 = vpack.c.bf16 %v964, %v961
    %971 = vst [vmem:[#allocation3] sm:$0xff] %v967
    %972 = vst [vmem:[#allocation3 + $0x8] sm:$0xff] %v968
    %973 = vst [vmem:[#allocation3 + $0x10] sm:$0xff] %v969
    %974 = vst [vmem:[#allocation3 + $0x18] sm:$0xff] %v970
    %v975 = vld [vmem:[%s5] sm:$0xf]
    %v976 = vld [vmem:[%s5 + $0x4] sm:$0xf]
    %v977 = vld [vmem:[%s5 + $0x8] sm:$0xf]
    %v978 = vld [vmem:[%s5 + $0xc] sm:$0xf]
    %v979 = vld [vmem:[%s6] sm:$0x1]
    %s980 = scalar_lea.vmem %s7, 8
    %v981 = vld [vmem:[%s980] sm:$0xff]
    %s982 = scalar_lea.vmem %s8, 8
    %v983 = vld [vmem:[%s982] sm:$0xff]
    %v984 = vld [vmem:[#allocation3] sm:$0xf]
    %v985 = vunpack.c.l.bf16 %v984
    %v987 = vlaneseq
    %v988 = vshrl.u32 %v987, 7
    %v989 = vsub.s32 0, %v988
    %v990 = vrot.slane %v979, %v989
    %v992 = vadd.f32 %v985, %v990
    %v993 = vpack.c.bf16 %v981, %v981
    %v998 = vunpack.c.l.b16 %v975
    %v999 = vunpack.c.l.b16 %v976
    %v1000 = vunpack.c.l.b16 %v977
    %v1001 = vunpack.c.l.b16 %v978
    %v1002 = vpack.c.b16 %v999, %v998
    %v1003 = vpack.c.b16 %v1001, %v1000
    %v1007 = vsel %vm104, %v993, 0
    %1009 = vmatprep.subr.bf16.mxu0 0
    %1010 = vmatpush1.bf16.msra.mxu0 %v1002
    %1011 = vmatprep.subr.bf16.mxu0 0
    %1012 = vmatpush1.bf16.msra.mxu0 %v1003
    %1013 = vmatprep.subr.bf16.mxu0 0
    %1014 = vmatpush1.bf16.msra.mxu0 0
    %1015 = vmatprep.subr.bf16.mxu0 0
    %1016 = vmatpush1.bf16.msra.mxu0 0
    %1017 = vmatprep.subr.bf16.mxu0 0
    %1018 = vmatpush1.bf16.msra.mxu0 0
    %1019 = vmatprep.subr.bf16.mxu0 0
    %1020 = vmatpush1.bf16.msra.mxu0 0
    %1021 = vmatprep.subr.bf16.mxu0 0
    %1022 = vmatpush1.bf16.msra.mxu0 0
    %1023 = vmatprep.subr.bf16.mxu0 0
    %1024 = vmatpush1.bf16.msra.mxu0 0
    %1025 = vmatprep.subr.bf16.mxu0 0
    %1026 = vmatpush1.bf16.msra.mxu0 0
    %1027 = vmatprep.subr.bf16.mxu0 0
    %1028 = vmatpush1.bf16.msra.mxu0 0
    %1029 = vmatprep.subr.bf16.mxu0 0
    %1030 = vmatpush1.bf16.msra.mxu0 0
    %1031 = vmatprep.subr.bf16.mxu0 0
    %1032 = vmatpush1.bf16.msra.mxu0 0
    %1033 = vmatprep.subr.bf16.mxu0 0
    %1034 = vmatpush1.bf16.msra.mxu0 0
    %1035 = vmatprep.subr.bf16.mxu0 0
    %1036 = vmatpush1.bf16.msra.mxu0 0
    %1037 = vmatprep.subr.bf16.mxu0 0
    %1038 = vmatpush1.bf16.msra.mxu0 0
    %1039 = vmatprep.subr.bf16.mxu0 0
    %1040 = vmatpush1.bf16.msra.mxu0 0
    %1041 = vmatprep.mubr.bf16.mxu0 0
    %1042 = vmatmul.mubr.bf16.gmra.mrb[0].mxu0 %v1007
    %v1043 = vpop.f32.mrb[0].mxu0
    %v1044 = vadd.f32 0.0, %v1043
    %v1045 = vpop.f32.mrb[0].mxu0
    %v1046 = vpop.f32.mrb[0].mxu0
    %v1047 = vpop.f32.mrb[0].mxu0
    %1048 = vdwg.mxu0
    %v1049 = vadd.f32 %v992, %v1044
    %v1050 = vxor.u32 %v1049, 2147483648
    %v1051 = vmul.f32 %v1050, 1.442695
    %v1052 = vpow.pop %v1051
    %v1053 = vadd.f32 %v1052, 1.0
    %v1054 = vrcp.pop %v1053
    %v1055 = vmul.f32 1.0, %v1054
    %v1056 = vtanh.pop %v1049
    %1058 = vrot.lane.b32.xlu0 %v983, 32
    %v1059 = vpop.permute.xlu0 %1058
    %v1061 = vmul.f32 %v1055, %v1059
    %1063 = vrot.lane.b32.xlu0 %v1056, 64
    %v1064 = vpop.permute.xlu0 %1063
    %v1066 = vmul.f32 %v1055, %v1064
    %1068 = vrot.lane.b32.xlu0 %v1066, 32
    %v1069 = vpop.permute.xlu0 %1068
    %v1071 = vadd.f32 %v1061, %v1069
    %v1072 = vtanh.pop %v1071
    %1074 = vrot.lane.b32.xlu0 %v1072, 64
    %v1075 = vpop.permute.xlu0 %1074
    %v1077 = vmul.f32 %v1055, %v1075
    %v1078 = vld [vmem:[#allocation3] sm:$0xf0]
    %v1080 = vrot.slane %v1078, 4
    %v1082 = vunpack.c.l.bf16 %v1080
    %v1083 = vadd.f32 %v1082, %v990
    %v1084 = vpack.c.bf16 %v1077, %v1077
    %1086 = vrot.lane.b32.xlu0 %v1084, 32
    %v1087 = vpop.permute.xlu0 %1086
    %v1089 = vsel %vm104, %v1087, 0
    %1091 = vmatprep.subr.bf16.mxu0 0
    %1092 = vmatpush1.bf16.msra.mxu0 %v1002
    %1093 = vmatprep.subr.bf16.mxu0 0
    %1094 = vmatpush1.bf16.msra.mxu0 %v1003
    %1095 = vmatprep.subr.bf16.mxu0 0
    %1096 = vmatpush1.bf16.msra.mxu0 0
    %1097 = vmatprep.subr.bf16.mxu0 0
    %1098 = vmatpush1.bf16.msra.mxu0 0
    %1099 = vmatprep.subr.bf16.mxu0 0
    %1100 = vmatpush1.bf16.msra.mxu0 0
    %1101 = vmatprep.subr.bf16.mxu0 0
    %1102 = vmatpush1.bf16.msra.mxu0 0
    %1103 = vmatprep.subr.bf16.mxu0 0
    %1104 = vmatpush1.bf16.msra.mxu0 0
    %1105 = vmatprep.subr.bf16.mxu0 0
    %1106 = vmatpush1.bf16.msra.mxu0 0
    %1107 = vmatprep.subr.bf16.mxu0 0
    %1108 = vmatpush1.bf16.msra.mxu0 0
    %1109 = vmatprep.subr.bf16.mxu0 0
    %1110 = vmatpush1.bf16.msra.mxu0 0
    %1111 = vmatprep.subr.bf16.mxu0 0
    %1112 = vmatpush1.bf16.msra.mxu0 0
    %1113 = vmatprep.subr.bf16.mxu0 0
    %1114 = vmatpush1.bf16.msra.mxu0 0
    %1115 = vmatprep.subr.bf16.mxu0 0
    %1116 = vmatpush1.bf16.msra.mxu0 0
    %1117 = vmatprep.subr.bf16.mxu0 0
    %1118 = vmatpush1.bf16.msra.mxu0 0
    %1119 = vmatprep.subr.bf16.mxu0 0
    %1120 = vmatpush1.bf16.msra.mxu0 0
    %1121 = vmatprep.subr.bf16.mxu0 0
    %1122 = vmatpush1.bf16.msra.mxu0 0
    %1123 = vmatprep.mubr.bf16.mxu0 0
    %1124 = vmatmul.mubr.bf16.gmra.mrb[0].mxu0 %v1089
    %v1125 = vpop.f32.mrb[0].mxu0
    %v1126 = vadd.f32 0.0, %v1125
    %v1127 = vpop.f32.mrb[0].mxu0
    %v1128 = vpop.f32.mrb[0].mxu0
    %v1129 = vpop.f32.mrb[0].mxu0
    %1130 = vdwg.mxu0
    %v1131 = vadd.f32 %v1083, %v1126
    %v1132 = vxor.u32 %v1131, 2147483648
    %v1133 = vmul.f32 %v1132, 1.442695
    %v1134 = vpow.pop %v1133
    %v1135 = vadd.f32 %v1134, 1.0
    %v1136 = vrcp.pop %v1135
    %v1137 = vmul.f32 1.0, %v1136
    %v1138 = vtanh.pop %v1131
    %v1139 = vmul.f32 %v1137, %v1071
    %1141 = vrot.lane.b32.xlu0 %v1138, 64
    %v1142 = vpop.permute.xlu0 %1141
    %v1144 = vmul.f32 %v1137, %v1142
    %1146 = vrot.lane.b32.xlu0 %v1144, 32
    %v1147 = vpop.permute.xlu0 %1146
    %v1149 = vadd.f32 %v1139, %v1147
    %v1150 = vtanh.pop %v1149
    %1152 = vrot.lane.b32.xlu0 %v1150, 64
    %v1153 = vpop.permute.xlu0 %1152
    %v1155 = vmul.f32 %v1137, %v1153
    %v1156 = vld [vmem:[#allocation3 + $0x8] sm:$0xf]
    %v1157 = vunpack.c.l.bf16 %v1156
    %v1158 = vadd.f32 %v1157, %v990
    %v1159 = vpack.c.bf16 %v1155, %v1155
    %1161 = vrot.lane.b32.xlu0 %v1159, 32
    %v1162 = vpop.permute.xlu0 %1161
    %v1164 = vsel %vm104, %v1162, 0
    %1166 = vmatprep.subr.bf16.mxu0 0
    %1167 = vmatpush1.bf16.msra.mxu0 %v1002
    %1168 = vmatprep.subr.bf16.mxu0 0
    %1169 = vmatpush1.bf16.msra.mxu0 %v1003
    %1170 = vmatprep.subr.bf16.mxu0 0
    %1171 = vmatpush1.bf16.msra.mxu0 0
    %1172 = vmatprep.subr.bf16.mxu0 0
    %1173 = vmatpush1.bf16.msra.mxu0 0
    %1174 = vmatprep.subr.bf16.mxu0 0
    %1175 = vmatpush1.bf16.msra.mxu0 0
    %1176 = vmatprep.subr.bf16.mxu0 0
    %1177 = vmatpush1.bf16.msra.mxu0 0
    %1178 = vmatprep.subr.bf16.mxu0 0
    %1179 = vmatpush1.bf16.msra.mxu0 0
    %1180 = vmatprep.subr.bf16.mxu0 0
    %1181 = vmatpush1.bf16.msra.mxu0 0
    %1182 = vmatprep.subr.bf16.mxu0 0
    %1183 = vmatpush1.bf16.msra.mxu0 0
    %1184 = vmatprep.subr.bf16.mxu0 0
    %1185 = vmatpush1.bf16.msra.mxu0 0
    %1186 = vmatprep.subr.bf16.mxu0 0
    %1187 = vmatpush1.bf16.msra.mxu0 0
    %1188 = vmatprep.subr.bf16.mxu0 0
    %1189 = vmatpush1.bf16.msra.mxu0 0
    %1190 = vmatprep.subr.bf16.mxu0 0
    %1191 = vmatpush1.bf16.msra.mxu0 0
    %1192 = vmatprep.subr.bf16.mxu0 0
    %1193 = vmatpush1.bf16.msra.mxu0 0
    %1194 = vmatprep.subr.bf16.mxu0 0
    %1195 = vmatpush1.bf16.msra.mxu0 0
    %1196 = vmatprep.subr.bf16.mxu0 0
    %1197 = vmatpush1.bf16.msra.mxu0 0
    %1198 = vmatprep.mubr.bf16.mxu0 0
    %1199 = vmatmul.mubr.bf16.gmra.mrb[0].mxu0 %v1164
    %v1200 = vpop.f32.mrb[0].mxu0
    %v1201 = vadd.f32 0.0, %v1200
    %v1202 = vpop.f32.mrb[0].mxu0
    %v1203 = vpop.f32.mrb[0].mxu0
    %v1204 = vpop.f32.mrb[0].mxu0
    %1205 = vdwg.mxu0
    %v1206 = vadd.f32 %v1158, %v1201
    %v1207 = vxor.u32 %v1206, 2147483648
    %v1208 = vmul.f32 %v1207, 1.442695
    %v1209 = vpow.pop %v1208
    %v1210 = vadd.f32 %v1209, 1.0
    %v1211 = vrcp.pop %v1210
    %v1212 = vmul.f32 1.0, %v1211
    %v1213 = vtanh.pop %v1206
    %v1214 = vmul.f32 %v1212, %v1149
    %1216 = vrot.lane.b32.xlu0 %v1213, 64
    %v1217 = vpop.permute.xlu0 %1216
    %v1219 = vmul.f32 %v1212, %v1217
    %1221 = vrot.lane.b32.xlu0 %v1219, 32
    %v1222 = vpop.permute.xlu0 %1221
    %v1224 = vadd.f32 %v1214, %v1222
    %v1225 = vtanh.pop %v1224
    %1227 = vrot.lane.b32.xlu0 %v1225, 64
    %v1228 = vpop.permute.xlu0 %1227
    %v1230 = vmul.f32 %v1212, %v1228
    %v1231 = vld [vmem:[#allocation3 + $0x8] sm:$0xf0]
    %v1233 = vrot.slane %v1231, 4
    %v1235 = vunpack.c.l.bf16 %v1233
    %v1236 = vadd.f32 %v1235, %v990
    %v1237 = vpack.c.bf16 %v1230, %v1230
    %1239 = vrot.lane.b32.xlu0 %v1237, 32
    %v1240 = vpop.permute.xlu0 %1239
    %v1242 = vsel %vm104, %v1240, 0
    %1244 = vmatprep.subr.bf16.mxu0 0
    %1245 = vmatpush1.bf16.msra.mxu0 %v1002
    %1246 = vmatprep.subr.bf16.mxu0 0
    %1247 = vmatpush1.bf16.msra.mxu0 %v1003
    %1248 = vmatprep.subr.bf16.mxu0 0
    %1249 = vmatpush1.bf16.msra.mxu0 0
    %1250 = vmatprep.subr.bf16.mxu0 0
    %1251 = vmatpush1.bf16.msra.mxu0 0
    %1252 = vmatprep.subr.bf16.mxu0 0
    %1253 = vmatpush1.bf16.msra.mxu0 0
    %1254 = vmatprep.subr.bf16.mxu0 0
    %1255 = vmatpush1.bf16.msra.mxu0 0
    %1256 = vmatprep.subr.bf16.mxu0 0
    %1257 = vmatpush1.bf16.msra.mxu0 0
    %1258 = vmatprep.subr.bf16.mxu0 0
    %1259 = vmatpush1.bf16.msra.mxu0 0
    %1260 = vmatprep.subr.bf16.mxu0 0
    %1261 = vmatpush1.bf16.msra.mxu0 0
    %1262 = vmatprep.subr.bf16.mxu0 0
    %1263 = vmatpush1.bf16.msra.mxu0 0
    %1264 = vmatprep.subr.bf16.mxu0 0
    %1265 = vmatpush1.bf16.msra.mxu0 0
    %1266 = vmatprep.subr.bf16.mxu0 0
    %1267 = vmatpush1.bf16.msra.mxu0 0
    %1268 = vmatprep.subr.bf16.mxu0 0
    %1269 = vmatpush1.bf16.msra.mxu0 0
    %1270 = vmatprep.subr.bf16.mxu0 0
    %1271 = vmatpush1.bf16.msra.mxu0 0
    %1272 = vmatprep.subr.bf16.mxu0 0
    %1273 = vmatpush1.bf16.msra.mxu0 0
    %1274 = vmatprep.subr.bf16.mxu0 0
    %1275 = vmatpush1.bf16.msra.mxu0 0
    %1276 = vmatprep.mubr.bf16.mxu0 0
    %1277 = vmatmul.mubr.bf16.gmra.mrb[0].mxu0 %v1242
    %v1278 = vpop.f32.mrb[0].mxu0
    %v1279 = vadd.f32 0.0, %v1278
    %v1280 = vpop.f32.mrb[0].mxu0
    %v1281 = vpop.f32.mrb[0].mxu0
    %v1282 = vpop.f32.mrb[0].mxu0
    %1283 = vdwg.mxu0
    %v1284 = vadd.f32 %v1236, %v1279
    %v1285 = vxor.u32 %v1284, 2147483648
    %v1286 = vmul.f32 %v1285, 1.442695
    %v1287 = vpow.pop %v1286
    %v1288 = vadd.f32 %v1287, 1.0
    %v1289 = vrcp.pop %v1288
    %v1290 = vmul.f32 1.0, %v1289
    %v1291 = vtanh.pop %v1284
    %v1292 = vmul.f32 %v1290, %v1224
    %1294 = vrot.lane.b32.xlu0 %v1291, 64
    %v1295 = vpop.permute.xlu0 %1294
    %v1297 = vmul.f32 %v1290, %v1295
    %1299 = vrot.lane.b32.xlu0 %v1297, 32
    %v1300 = vpop.permute.xlu0 %1299
    %v1302 = vadd.f32 %v1292, %v1300
    %v1303 = vtanh.pop %v1302
    %1305 = vrot.lane.b32.xlu0 %v1303, 64
    %v1306 = vpop.permute.xlu0 %1305
    %v1308 = vmul.f32 %v1290, %v1306
    %v1309 = vld [vmem:[#allocation3 + $0x10] sm:$0xf]
    %v1310 = vunpack.c.l.bf16 %v1309
    %v1311 = vadd.f32 %v1310, %v990
    %v1312 = vpack.c.bf16 %v1308, %v1308
    %1314 = vrot.lane.b32.xlu0 %v1312, 32
    %v1315 = vpop.permute.xlu0 %1314
    %v1317 = vsel %vm104, %v1315, 0
    %1319 = vmatprep.subr.bf16.mxu0 0
    %1320 = vmatpush1.bf16.msra.mxu0 %v1002
    %1321 = vmatprep.subr.bf16.mxu0 0
    %1322 = vmatpush1.bf16.msra.mxu0 %v1003
    %1323 = vmatprep.subr.bf16.mxu0 0
    %1324 = vmatpush1.bf16.msra.mxu0 0
    %1325 = vmatprep.subr.bf16.mxu0 0
    %1326 = vmatpush1.bf16.msra.mxu0 0
    %1327 = vmatprep.subr.bf16.mxu0 0
    %1328 = vmatpush1.bf16.msra.mxu0 0
    %1329 = vmatprep.subr.bf16.mxu0 0
    %1330 = vmatpush1.bf16.msra.mxu0 0
    %1331 = vmatprep.subr.bf16.mxu0 0
    %1332 = vmatpush1.bf16.msra.mxu0 0
    %1333 = vmatprep.subr.bf16.mxu0 0
    %1334 = vmatpush1.bf16.msra.mxu0 0
    %1335 = vmatprep.subr.bf16.mxu0 0
    %1336 = vmatpush1.bf16.msra.mxu0 0
    %1337 = vmatprep.subr.bf16.mxu0 0
    %1338 = vmatpush1.bf16.msra.mxu0 0
    %1339 = vmatprep.subr.bf16.mxu0 0
    %1340 = vmatpush1.bf16.msra.mxu0 0
    %1341 = vmatprep.subr.bf16.mxu0 0
    %1342 = vmatpush1.bf16.msra.mxu0 0
    %1343 = vmatprep.subr.bf16.mxu0 0
    %1344 = vmatpush1.bf16.msra.mxu0 0
    %1345 = vmatprep.subr.bf16.mxu0 0
    %1346 = vmatpush1.bf16.msra.mxu0 0
    %1347 = vmatprep.subr.bf16.mxu0 0
    %1348 = vmatpush1.bf16.msra.mxu0 0
    %1349 = vmatprep.subr.bf16.mxu0 0
    %1350 = vmatpush1.bf16.msra.mxu0 0
    %1351 = vmatprep.mubr.bf16.mxu0 0
    %1352 = vmatmul.mubr.bf16.gmra.mrb[0].mxu0 %v1317
    %v1353 = vpop.f32.mrb[0].mxu0
    %v1354 = vadd.f32 0.0, %v1353
    %v1355 = vpop.f32.mrb[0].mxu0
    %v1356 = vpop.f32.mrb[0].mxu0
    %v1357 = vpop.f32.mrb[0].mxu0
    %1358 = vdwg.mxu0
    %v1359 = vadd.f32 %v1311, %v1354
    %v1360 = vxor.u32 %v1359, 2147483648
    %v1361 = vmul.f32 %v1360, 1.442695
    %v1362 = vpow.pop %v1361
    %v1363 = vadd.f32 %v1362, 1.0
    %v1364 = vrcp.pop %v1363
    %v1365 = vmul.f32 1.0, %v1364
    %v1366 = vtanh.pop %v1359
    %v1367 = vmul.f32 %v1365, %v1302
    %1369 = vrot.lane.b32.xlu0 %v1366, 64
    %v1370 = vpop.permute.xlu0 %1369
    %v1372 = vmul.f32 %v1365, %v1370
    %1374 = vrot.lane.b32.xlu0 %v1372, 32
    %v1375 = vpop.permute.xlu0 %1374
    %v1377 = vadd.f32 %v1367, %v1375
    %v1378 = vtanh.pop %v1377
    %1380 = vrot.lane.b32.xlu0 %v1378, 64
    %v1381 = vpop.permute.xlu0 %1380
    %v1383 = vmul.f32 %v1365, %v1381
    %v1384 = vld [vmem:[#allocation3 + $0x10] sm:$0xf0]
    %v1386 = vrot.slane %v1384, 4
    %v1388 = vunpack.c.l.bf16 %v1386
    %v1389 = vadd.f32 %v1388, %v990
    %v1390 = vpack.c.bf16 %v1383, %v1383
    %1392 = vrot.lane.b32.xlu0 %v1390, 32
    %v1393 = vpop.permute.xlu0 %1392
    %v1395 = vsel %vm104, %v1393, 0
    %1397 = vmatprep.subr.bf16.mxu0 0
    %1398 = vmatpush1.bf16.msra.mxu0 %v1002
    %1399 = vmatprep.subr.bf16.mxu0 0
    %1400 = vmatpush1.bf16.msra.mxu0 %v1003
    %1401 = vmatprep.subr.bf16.mxu0 0
    %1402 = vmatpush1.bf16.msra.mxu0 0
    %1403 = vmatprep.subr.bf16.mxu0 0
    %1404 = vmatpush1.bf16.msra.mxu0 0
    %1405 = vmatprep.subr.bf16.mxu0 0
    %1406 = vmatpush1.bf16.msra.mxu0 0
    %1407 = vmatprep.subr.bf16.mxu0 0
    %1408 = vmatpush1.bf16.msra.mxu0 0
    %1409 = vmatprep.subr.bf16.mxu0 0
    %1410 = vmatpush1.bf16.msra.mxu0 0
    %1411 = vmatprep.subr.bf16.mxu0 0
    %1412 = vmatpush1.bf16.msra.mxu0 0
    %1413 = vmatprep.subr.bf16.mxu0 0
    %1414 = vmatpush1.bf16.msra.mxu0 0
    %1415 = vmatprep.subr.bf16.mxu0 0
    %1416 = vmatpush1.bf16.msra.mxu0 0
    %1417 = vmatprep.subr.bf16.mxu0 0
    %1418 = vmatpush1.bf16.msra.mxu0 0
    %1419 = vmatprep.subr.bf16.mxu0 0
    %1420 = vmatpush1.bf16.msra.mxu0 0
    %1421 = vmatprep.subr.bf16.mxu0 0
    %1422 = vmatpush1.bf16.msra.mxu0 0
    %1423 = vmatprep.subr.bf16.mxu0 0
    %1424 = vmatpush1.bf16.msra.mxu0 0
    %1425 = vmatprep.subr.bf16.mxu0 0
    %1426 = vmatpush1.bf16.msra.mxu0 0
    %1427 = vmatprep.subr.bf16.mxu0 0
    %1428 = vmatpush1.bf16.msra.mxu0 0
    %1429 = vmatprep.mubr.bf16.mxu0 0
    %1430 = vmatmul.mubr.bf16.gmra.mrb[0].mxu0 %v1395
    %v1431 = vpop.f32.mrb[0].mxu0
    %v1432 = vadd.f32 0.0, %v1431
    %v1433 = vpop.f32.mrb[0].mxu0
    %v1434 = vpop.f32.mrb[0].mxu0
    %v1435 = vpop.f32.mrb[0].mxu0
    %1436 = vdwg.mxu0
    %v1437 = vadd.f32 %v1389, %v1432
    %v1438 = vxor.u32 %v1437, 2147483648
    %v1439 = vmul.f32 %v1438, 1.442695
    %v1440 = vpow.pop %v1439
    %v1441 = vadd.f32 %v1440, 1.0
    %v1442 = vrcp.pop %v1441
    %v1443 = vmul.f32 1.0, %v1442
    %v1444 = vtanh.pop %v1437
    %v1445 = vmul.f32 %v1443, %v1377
    %1447 = vrot.lane.b32.xlu0 %v1444, 64
    %v1448 = vpop.permute.xlu0 %1447
    %v1450 = vmul.f32 %v1443, %v1448
    %1452 = vrot.lane.b32.xlu0 %v1450, 32
    %v1453 = vpop.permute.xlu0 %1452
    %v1455 = vadd.f32 %v1445, %v1453
    %v1456 = vtanh.pop %v1455
    %1458 = vrot.lane.b32.xlu0 %v1456, 64
    %v1459 = vpop.permute.xlu0 %1458
    %v1461 = vmul.f32 %v1443, %v1459
    %v1462 = vld [vmem:[#allocation3 + $0x18] sm:$0xf]
    %v1463 = vunpack.c.l.bf16 %v1462
    %v1464 = vadd.f32 %v1463, %v990
    %v1465 = vpack.c.bf16 %v1461, %v1461
    %1467 = vrot.lane.b32.xlu0 %v1465, 32
    %v1468 = vpop.permute.xlu0 %1467
    %v1470 = vsel %vm104, %v1468, 0
    %1472 = vmatprep.subr.bf16.mxu0 0
    %1473 = vmatpush1.bf16.msra.mxu0 %v1002
    %1474 = vmatprep.subr.bf16.mxu0 0
    %1475 = vmatpush1.bf16.msra.mxu0 %v1003
    %1476 = vmatprep.subr.bf16.mxu0 0
    %1477 = vmatpush1.bf16.msra.mxu0 0
    %1478 = vmatprep.subr.bf16.mxu0 0
    %1479 = vmatpush1.bf16.msra.mxu0 0
    %1480 = vmatprep.subr.bf16.mxu0 0
    %1481 = vmatpush1.bf16.msra.mxu0 0
    %1482 = vmatprep.subr.bf16.mxu0 0
    %1483 = vmatpush1.bf16.msra.mxu0 0
    %1484 = vmatprep.subr.bf16.mxu0 0
    %1485 = vmatpush1.bf16.msra.mxu0 0
    %1486 = vmatprep.subr.bf16.mxu0 0
    %1487 = vmatpush1.bf16.msra.mxu0 0
    %1488 = vmatprep.subr.bf16.mxu0 0
    %1489 = vmatpush1.bf16.msra.mxu0 0
    %1490 = vmatprep.subr.bf16.mxu0 0
    %1491 = vmatpush1.bf16.msra.mxu0 0
    %1492 = vmatprep.subr.bf16.mxu0 0
    %1493 = vmatpush1.bf16.msra.mxu0 0
    %1494 = vmatprep.subr.bf16.mxu0 0
    %1495 = vmatpush1.bf16.msra.mxu0 0
    %1496 = vmatprep.subr.bf16.mxu0 0
    %1497 = vmatpush1.bf16.msra.mxu0 0
    %1498 = vmatprep.subr.bf16.mxu0 0
    %1499 = vmatpush1.bf16.msra.mxu0 0
    %1500 = vmatprep.subr.bf16.mxu0 0
    %1501 = vmatpush1.bf16.msra.mxu0 0
    %1502 = vmatprep.subr.bf16.mxu0 0
    %1503 = vmatpush1.bf16.msra.mxu0 0
    %1504 = vmatprep.mubr.bf16.mxu0 0
    %1505 = vmatmul.mubr.bf16.gmra.mrb[0].mxu0 %v1470
    %v1506 = vpop.f32.mrb[0].mxu0
    %v1507 = vadd.f32 0.0, %v1506
    %v1508 = vpop.f32.mrb[0].mxu0
    %v1509 = vpop.f32.mrb[0].mxu0
    %v1510 = vpop.f32.mrb[0].mxu0
    %1511 = vdwg.mxu0
    %v1512 = vadd.f32 %v1464, %v1507
    %v1513 = vxor.u32 %v1512, 2147483648
    %v1514 = vmul.f32 %v1513, 1.442695
    %v1515 = vpow.pop %v1514
    %v1516 = vadd.f32 %v1515, 1.0
    %v1517 = vrcp.pop %v1516
    %v1518 = vmul.f32 1.0, %v1517
    %v1519 = vtanh.pop %v1512
    %v1520 = vmul.f32 %v1518, %v1455
    %1522 = vrot.lane.b32.xlu0 %v1519, 64
    %v1523 = vpop.permute.xlu0 %1522
    %v1525 = vmul.f32 %v1518, %v1523
    %1527 = vrot.lane.b32.xlu0 %v1525, 32
    %v1528 = vpop.permute.xlu0 %1527
    %v1530 = vadd.f32 %v1520, %v1528
    %v1531 = vtanh.pop %v1530
    %1533 = vrot.lane.b32.xlu0 %v1531, 64
    %v1534 = vpop.permute.xlu0 %1533
    %v1536 = vmul.f32 %v1518, %v1534
    %v1537 = vld [vmem:[#allocation3 + $0x18] sm:$0xf0]
    %v1539 = vrot.slane %v1537, 4
    %v1541 = vunpack.c.l.bf16 %v1539
    %v1542 = vadd.f32 %v1541, %v990
    %v1543 = vpack.c.bf16 %v1536, %v1536
    %1545 = vrot.lane.b32.xlu0 %v1543, 32
    %v1546 = vpop.permute.xlu0 %1545
    %v1548 = vsel %vm104, %v1546, 0
    %1550 = vmatprep.subr.bf16.mxu0 0
    %1551 = vmatpush1.bf16.msra.mxu0 %v1002
    %1552 = vmatprep.subr.bf16.mxu0 0
    %1553 = vmatpush1.bf16.msra.mxu0 %v1003
    %1554 = vmatprep.subr.bf16.mxu0 0
    %1555 = vmatpush1.bf16.msra.mxu0 0
    %1556 = vmatprep.subr.bf16.mxu0 0
    %1557 = vmatpush1.bf16.msra.mxu0 0
    %1558 = vmatprep.subr.bf16.mxu0 0
    %1559 = vmatpush1.bf16.msra.mxu0 0
    %1560 = vmatprep.subr.bf16.mxu0 0
    %1561 = vmatpush1.bf16.msra.mxu0 0
    %1562 = vmatprep.subr.bf16.mxu0 0
    %1563 = vmatpush1.bf16.msra.mxu0 0
    %1564 = vmatprep.subr.bf16.mxu0 0
    %1565 = vmatpush1.bf16.msra.mxu0 0
    %1566 = vmatprep.subr.bf16.mxu0 0
    %1567 = vmatpush1.bf16.msra.mxu0 0
    %1568 = vmatprep.subr.bf16.mxu0 0
    %1569 = vmatpush1.bf16.msra.mxu0 0
    %1570 = vmatprep.subr.bf16.mxu0 0
    %1571 = vmatpush1.bf16.msra.mxu0 0
    %1572 = vmatprep.subr.bf16.mxu0 0
    %1573 = vmatpush1.bf16.msra.mxu0 0
    %1574 = vmatprep.subr.bf16.mxu0 0
    %1575 = vmatpush1.bf16.msra.mxu0 0
    %1576 = vmatprep.subr.bf16.mxu0 0
    %1577 = vmatpush1.bf16.msra.mxu0 0
    %1578 = vmatprep.subr.bf16.mxu0 0
    %1579 = vmatpush1.bf16.msra.mxu0 0
    %1580 = vmatprep.subr.bf16.mxu0 0
    %1581 = vmatpush1.bf16.msra.mxu0 0
    %1582 = vmatprep.mubr.bf16.mxu0 0
    %1583 = vmatmul.mubr.bf16.gmra.mrb[0].mxu0 %v1548
    %v1584 = vpop.f32.mrb[0].mxu0
    %v1585 = vadd.f32 0.0, %v1584
    %v1586 = vpop.f32.mrb[0].mxu0
    %v1587 = vpop.f32.mrb[0].mxu0
    %v1588 = vpop.f32.mrb[0].mxu0
    %1589 = vdwg.mxu0
    %v1590 = vadd.f32 %v1542, %v1585
    %v1591 = vxor.u32 %v1590, 2147483648
    %v1592 = vmul.f32 %v1591, 1.442695
    %v1593 = vpow.pop %v1592
    %v1594 = vadd.f32 %v1593, 1.0
    %v1595 = vrcp.pop %v1594
    %v1596 = vmul.f32 1.0, %v1595
    %v1597 = vtanh.pop %v1590
    %v1598 = vmul.f32 %v1596, %v1530
    %1600 = vrot.lane.b32.xlu0 %v1597, 64
    %v1601 = vpop.permute.xlu0 %1600
    %v1603 = vmul.f32 %v1596, %v1601
    %1605 = vrot.lane.b32.xlu0 %v1603, 32
    %v1606 = vpop.permute.xlu0 %1605
    %v1608 = vadd.f32 %v1598, %v1606
    %v1609 = vtanh.pop %v1608
    %1611 = vrot.lane.b32.xlu0 %v1609, 64
    %v1612 = vpop.permute.xlu0 %1611
    %v1614 = vmul.f32 %v1596, %v1612
    %1616 = vrot.lane.b32.xlu0 %v1614, 32
    %v1617 = vpop.permute.xlu0 %1616
    %s1619 = scalar_lea.vmem %s14, 8
    %1620 = vst.msk [vmem:[%s1619] sm:$0xff] %vm104, %v1617
    %1622 = vrot.lane.b32.xlu0 %v1608, 96
    %v1623 = vpop.permute.xlu0 %1622
    %s1625 = scalar_lea.vmem %s15, 8
    %1626 = vst.msk [vmem:[%s1625] sm:$0xff] %vm104, %v1623
    %v1627 = vpack.c.bf16 %v1614, %v1614
    %v1628 = vld [vmem:[%s9] sm:$0xf]
    %v1629 = vld [vmem:[%s9 + $0x4] sm:$0xf]
    %v1630 = vld [vmem:[%s9 + $0x8] sm:$0xf]
    %v1631 = vld [vmem:[%s9 + $0xc] sm:$0xf]
    %v1632 = vld [vmem:[%s10] sm:$0x1]
    %v1634 = vlaneseq
    %v1635 = vshrl.u32 %v1634, 7
    %v1636 = vsub.s32 0, %v1635
    %v1637 = vrot.slane %v1632, %v1636
    %1640 = vrot.lane.b32.xlu0 %v1627, 32
    %v1641 = vpop.permute.xlu0 %1640
    %v1646 = vunpack.c.l.b16 %v1628
    %v1647 = vunpack.c.l.b16 %v1629
    %v1648 = vunpack.c.l.b16 %v1630
    %v1649 = vunpack.c.l.b16 %v1631
    %v1650 = vpack.c.b16 %v1647, %v1646
    %v1651 = vpack.c.b16 %v1649, %v1648
    %v1655 = vsel %vm104, %v1641, 0
    %1657 = vmatprep.subr.bf16.mxu0 0
    %1658 = vmatpush1.bf16.msra.mxu0 %v1650
    %1659 = vmatprep.subr.bf16.mxu0 0
    %1660 = vmatpush1.bf16.msra.mxu0 %v1651
    %1661 = vmatprep.subr.bf16.mxu0 0
    %1662 = vmatpush1.bf16.msra.mxu0 0
    %1663 = vmatprep.subr.bf16.mxu0 0
    %1664 = vmatpush1.bf16.msra.mxu0 0
    %1665 = vmatprep.subr.bf16.mxu0 0
    %1666 = vmatpush1.bf16.msra.mxu0 0
    %1667 = vmatprep.subr.bf16.mxu0 0
    %1668 = vmatpush1.bf16.msra.mxu0 0
    %1669 = vmatprep.subr.bf16.mxu0 0
    %1670 = vmatpush1.bf16.msra.mxu0 0
    %1671 = vmatprep.subr.bf16.mxu0 0
    %1672 = vmatpush1.bf16.msra.mxu0 0
    %1673 = vmatprep.subr.bf16.mxu0 0
    %1674 = vmatpush1.bf16.msra.mxu0 0
    %1675 = vmatprep.subr.bf16.mxu0 0
    %1676 = vmatpush1.bf16.msra.mxu0 0
    %1677 = vmatprep.subr.bf16.mxu0 0
    %1678 = vmatpush1.bf16.msra.mxu0 0
    %1679 = vmatprep.subr.bf16.mxu0 0
    %1680 = vmatpush1.bf16.msra.mxu0 0
    %1681 = vmatprep.subr.bf16.mxu0 0
    %1682 = vmatpush1.bf16.msra.mxu0 0
    %1683 = vmatprep.subr.bf16.mxu0 0
    %1684 = vmatpush1.bf16.msra.mxu0 0
    %1685 = vmatprep.subr.bf16.mxu0 0
    %1686 = vmatpush1.bf16.msra.mxu0 0
    %1687 = vmatprep.subr.bf16.mxu0 0
    %1688 = vmatpush1.bf16.msra.mxu0 0
    %1689 = vmatprep.mubr.bf16.mxu0 0
    %1690 = vmatmul.mubr.bf16.gmra.mrb[0].mxu0 %v1655
    %v1691 = vpop.f32.mrb[0].mxu0
    %v1692 = vadd.f32 %v1637, %v1691
    %v1693 = vpop.f32.mrb[0].mxu0
    %v1694 = vpop.f32.mrb[0].mxu0
    %v1695 = vpop.f32.mrb[0].mxu0
    %1696 = vdwg.mxu0
    %vm1697 = vcmask 31744
    %v1698 = vsel %vm1697, %v1692, -inf
    %1699 = vmax.xlane.f32.xlu0 %v1698
    %v1700 = vpop.xlane.xlu0 %1699
    %v1701 = vsub.f32 %v1692, %v1700
    %v1702 = vmul.f32 %v1701, 1.442695
    %v1703 = vpow.pop %v1702
    %v1704 = vsel %vm1697, %v1703, 0.0
    %1705 = vadd.xlane.f32.xlu0 %v1704
    %v1706 = vpop.xlane.xlu0 %1705
    %v1707 = vlog2.pop %v1706
    %v1708 = vmul.f32 %v1707, 0.6931472
    %v1709 = vadd.f32 %v1708, %v1700
    %v1710 = vsub.f32 %v1692, %v1709
    %1711 = vst.msk [vmem:[%s12] sm:$0xff] %vm1697, %v1710
    %v1712 = vlaneseq
    %v1713 = vshrl.u32 %v1712, 7
    %v1714 = vlaneseq
    %v1715 = vand.u32 %v1714, 127
    %vm1716 = vcmp.eq.s32.totalorder %v1713, 0
    %s1717 = sld [smem:[#allocation4]]
    %v1718 = vstv %s1717
    %vm1719 = vcmp.eq.s32.totalorder %v1715, %v1718
    %vm1720 = vmand %vm1716, %vm1719
    %v1721 = vsel %vm1720, 1.0, 0.0
    %vm1722 = vcmp.eq.s32.totalorder %v1713, 1
    %s1723 = sld [smem:[#allocation4 + $0x1]]
    %v1724 = vstv %s1723
    %vm1725 = vcmp.eq.s32.totalorder %v1715, %v1724
    %vm1726 = vmand %vm1722, %vm1725
    %v1727 = vsel %vm1726, 1.0, %v1721
    %v1728 = vmul.f32 %v1710, %v1727
    %v1729 = vsel %vm1697, %v1728, 0.0
    %1730 = vadd.xlane.f32.xlu0 %v1729
    %v1731 = vpop.xlane.xlu0 %1730
    %v1732 = vrot.slane %v1731, 4
    %v1733 = vadd.f32 %v1731, %v1732
    %v1734 = vrot.slane %v1733, 2
    %v1735 = vadd.f32 %v1733, %v1734
    %v1736 = vrot.slane %v1735, 1
    %v1737 = vadd.f32 %v1735, %v1736
    %s1738 = vtos %v1737
    %s1739 = ssub.f32 0.0, %s1738
    %v1740 = vrcp.pop 2.0
    %s1741 = vtos %v1740
    %s1742 = smul.f32 %s1739, %s1741
    %v1743 = vstv %s1742
    %vm1744 = vcmask 0
    %1745 = vst.msk [vmem:[#allocation7] sm:$0x1] %vm1744, %v1743
    // Predicated region
    $region54: #{forward.1} parent=1 // pred_check
      _
    $region55: #{forward.1} parent=1 // pred_check_branch
      %1747 = sbr.rel (0) target = $region57
    $region56: #{forward.1} parent=1 // pred_region
      _
    $region57: #{forward.1} parent=1 // pred_fallthru
      _
    // Predicated region
    $region58: #{forward.1} parent=1 // pred_check
      _
    $region59: #{forward.1} parent=1 // pred_check_branch
      %1749 = sbr.rel (0) target = $region61
    $region60: #{forward.1} parent=1 // pred_region
      %s1751 = ssub.s32 16, 16
      %1752 = vsyncadd [#allocation5], %s1751
      %s1754 = sshll.u32 [#allocation7], 4
      %s1755 = int_to_ptr.vmem [resolvable:$true] %s1754
      %1757 = dma.vmem_to_hbm [thread:$0]  %s1755, 16, %s13, [#allocation5]
    $region61: #{forward.1} parent=1 // pred_fallthru
      _
    // Predicated region
    $region62: #{forward.1} parent=1 // pred_check
      _
    $region63: #{forward.1} parent=1 // pred_check_branch
      %1759 = sbr.rel (0) target = $region65
    $region64: #{forward.1} parent=1 // pred_region
      _
    $region65: #{forward.1} parent=1 // pred_fallthru
      _
    // Predicated region
    $region66: #{forward.1} parent=1 // pred_check
      _
    $region67: #{forward.1} parent=1 // pred_check_branch
      %1761 = sbr.rel (0) target = $region69
    $region68: #{forward.1} parent=1 // pred_region
      _
    $region69: #{forward.1} parent=1 // pred_fallthru
      _
    // Predicated region
    $region70: #{forward.1} parent=1 // pred_check
      _
    $region71: #{forward.1} parent=1 // pred_check_branch
      %1763 = sbr.rel (0) target = $region73
    $region72: #{forward.1} parent=1 // pred_region
      _
    $region73: #{forward.1} parent=1 // pred_fallthru
      _
    // Predicated region
    $region74: #{forward.1} parent=1 // pred_check
      _
    $region75: #{forward.1} parent=1 // pred_check_branch
      %1765 = sbr.rel (0) target = $region77
    $region76: #{forward.1} parent=1 // pred_region
      %1766 = dma.done [#allocation5], 16
    $region77: #{forward.1} parent=1 // pred_fallthru
      _
    // Predicated region
    $region78: #{forward.1} parent=1 // pred_check
      _
    $region79: #{forward.1} parent=1 // pred_check_branch
      %1768 = sbr.rel (0) target = $region81
    $region80: #{forward.1} parent=1 // pred_region
      _
    $region81: #{forward.1} parent=1 // pred_fallthru
      _
    // Predicated region
    $region82: #{forward.1} parent=1 // pred_check
      _
    $region83: #{forward.1} parent=1 // pred_check_branch
      %1770 = sbr.rel (0) target = $region85
    $region84: #{forward.1} parent=1 // pred_region
      _
    $region85: #{forward.1} parent=1 // pred_fallthru
      _
    %1771 = vsyncpa [#allocation5], 1
    %1772 = vsyncpa [#allocation6], 1

</llo_original>
